<compile_context>
chip_gen: v5e
topology: v5e:2x2
jax: 0.10.0
libtpu: 0.0.40
codegen_flags: <defaults>
</compile_context>

<pallas_src>
import jax
import jax.numpy as jnp
from jax import lax
from jax.experimental import pallas as pl
from jax.experimental.pallas import tpu as pltpu

_BN_EPS = 1e-5
_VMEM_LIMIT = 32 * 1024 * 1024


# ---------------------------------------------------------------------------
# Kernel 1: input sums + Gram for BN1 statistics (per-tile partials, parallel).
# ---------------------------------------------------------------------------
def _x_stats_kernel(x_ref, out_ref):
    """out = [X ; 1_8]^T X  for one row tile.

    x_ref   : (RT, W*Cin) bf16 lane-dense tile of the input slab
    out_ref : (W*Cin + 8, W*Cin) f32   rows [:W*Cin] = X^T X (Gram),
                                       rows [W*Cin:] = 8 copies of column sums
    """
    x = x_ref[...].astype(jnp.float32)
    ones = jnp.ones((x.shape[0], 8), jnp.float32)
    a = jnp.concatenate([x, ones], axis=1)
    out_ref[...] = lax.dot_general(
        a, x, dimension_numbers=(((0,), (0,)), ((), ())),
        preferred_element_type=jnp.float32)


# ---------------------------------------------------------------------------
# Kernel 2: fused conv1 + BN1 + ReLU + conv2, one image per grid step.
# ---------------------------------------------------------------------------
def _make_fused_conv_kernel(img_h, l1, l2):
    H = img_h

    def kernel(x_ref, w1_ref, sh1_ref, w2_ref, y2_ref, st_ref):
        # conv1 with BN1 scale folded into the (block-diagonal) weight + shift + ReLU
        h1 = jnp.maximum(
            jnp.dot(x_ref[...], w1_ref[...], preferred_element_type=jnp.float32)
            + sh1_ref[...], 0.0)                                  # (H, L1) f32

        # synthesize the 3x3 conv's height zero-padding around this image
        zrow = jnp.zeros((1, l1), jnp.float32)
        h1e = jnp.concatenate([zrow, h1, zrow], axis=0)           # (H+2, L1)

        # single stacked-K matmul: the three kh-shifted views side by side
        # (built once per step; kw mixing lives in the banded weight).
        stacked = jnp.concatenate(
            [h1e[kh:kh + H, :] for kh in range(3)], axis=1)       # (H, 3*L1)
        y2 = jnp.dot(stacked.astype(jnp.bfloat16), w2_ref[...],
                     preferred_element_type=jnp.float32)          # (H, L2)
        y2_ref[...] = y2

        # BN2 batch-statistic partials for this image: 8-sublane, lane-dense.
        s = jnp.sum(y2.reshape(H // 8, 8, l2), axis=0)            # (8, L2)
        q = jnp.sum(jnp.square(y2).reshape(H // 8, 8, l2), axis=0)
        st_ref[...] = jnp.concatenate([s, q], axis=1)             # (8, 2*L2)

    return kernel


# ---------------------------------------------------------------------------
# Kernel 3: BN2 (precomputed scale/shift) + ReLU + residual, 8-row-packed lanes.
# ---------------------------------------------------------------------------
def _bn2_relu_residual_kernel(y_ref, x_ref, scale_ref, shift_ref, o_ref):
    o_ref[...] = x_ref[...].astype(jnp.float32) + jnp.maximum(
        y_ref[...] * scale_ref[...] + shift_ref[...], 0.0)


# ---------------------------------------------------------------------------
# Wrapper
# ---------------------------------------------------------------------------
@jax.jit
def bottleneck_forward(x_nchw, params):
    f32, bf16 = jnp.float32, jnp.bfloat16
    w1_t = params["conv1_w"]            # (Chid, Cin, 1, 1)  PyTorch layout
    w2_t = params["conv2_w"]            # (Cout, Chid, 3, 3) PyTorch layout
    g1, be1 = params["bn1_g"], params["bn1_b"]
    g2, be2 = params["bn2_g"], params["bn2_b"]
    # conv biases exist in the module (bias=True) but cancel exactly against
    # the batch-statistics mean inside training-mode BatchNorm -> dropped.

    n, cin, h, w = x_nchw.shape
    chid, cout = w1_t.shape[0], w2_t.shape[0]
    assert cin == cout, "residual add requires ch_in == ch_out"
    assert h % 8 == 0

    l0, l1, l2 = w * cin, w * chid, w * cout
    p_count = n * h * w

    # --- single HBM activation copy: NCHW -> lane-dense (N*H, W*Cin) bf16 ----
    xf2 = jnp.transpose(x_nchw, (0, 2, 3, 1)).reshape(n * h, l0).astype(bf16)

    w1_mat = jnp.transpose(w1_t[:, :, 0, 0], (1, 0)).astype(f32)   # (Cin, Chid)

    # --- pass 1: input sums + Gram (parallel per-tile partials) --------------
    rt1 = min(n * h, 512)
    assert (n * h) % rt1 == 0   # TODO(synk): handle ragged last tiles
    t1 = (n * h) // rt1
    part1 = pl.pallas_call(
        _x_stats_kernel,
        out_shape=jax.ShapeDtypeStruct((t1, l0 + 8, l0), f32),
        grid=(t1,),
        in_specs=[pl.BlockSpec((rt1, l0), lambda i: (i, 0))],
        out_specs=pl.BlockSpec((None, l0 + 8, l0), lambda i: (i, 0, 0)),
        compiler_params=pltpu.CompilerParams(
            dimension_semantics=("parallel",),
            vmem_limit_bytes=_VMEM_LIMIT),
    )(xf2)

    gsum = jnp.sum(part1, axis=0)                     # (W*Cin+8, W*Cin)
    gram_lane = gsum[:l0]
    colsum = gsum[l0]
    # per-channel Gram: sum over width positions of the block diagonal
    gram_c = jnp.diagonal(gram_lane.reshape(w, cin, w, cin),
                          axis1=0, axis2=2).sum(-1)   # (Cin, Cin)
    sum_c = colsum.reshape(w, cin).sum(0)             # (Cin,)
    mean1 = (sum_c @ w1_mat) / p_count
    q1 = jnp.diagonal(w1_mat.T @ gram_c @ w1_mat) / p_count
    # TODO(synk): E[y^2]-E[y]^2 can cancel catastrophically at scale / large
    # activation means; switch to a two-pass (mean, then centered sumsq) there.
    var1 = jnp.maximum(q1 - mean1 * mean1, 0.0)
    scale1 = g1 * lax.rsqrt(var1 + _BN_EPS)
    shift1 = be1 - mean1 * scale1

    # --- weight preprocessing (trace-time glue) ------------------------------
    # conv1 weight with BN1 scale folded in, block-diagonal over width.
    w1s_big = jnp.kron(jnp.eye(w, dtype=f32),
                       w1_mat * scale1[None, :]).astype(bf16)       # (W*Cin, W*Chid)
    sh1_vec = jnp.tile(shift1, w).reshape(1, l1).astype(f32)

    # 3x3 conv as one stacked-K matmul: for each kh a banded (W*Chid, W*Cout)
    # matrix with kw + channel mixing folded in; width zero-padding is implicit
    # (edge taps simply have no band entry).
    w2_stack = jnp.concatenate([
        sum(jnp.kron(jnp.eye(w, w, k=1 - kw, dtype=f32),
                     jnp.transpose(w2_t[:, :, kh, kw], (1, 0)).astype(f32))
            for kw in range(3))
        for kh in range(3)], axis=0).astype(bf16)                   # (3*W*Chid, W*Cout)

    # --- pass 2: fused conv1+BN1+ReLU+conv2, one image per (parallel) step ---
    kernel2 = _make_fused_conv_kernel(h, l1, l2)
    y2, stats2 = pl.pallas_call(
        kernel2,
        out_shape=(jax.ShapeDtypeStruct((n * h, l2), f32),
                   jax.ShapeDtypeStruct((n, 8, 2 * l2), f32)),
        grid=(n,),
        in_specs=[pl.BlockSpec((h, l0), lambda i: (i, 0)),
                  pl.BlockSpec((l0, l1), lambda i: (0, 0)),
                  pl.BlockSpec((1, l1), lambda i: (0, 0)),
                  pl.BlockSpec((3 * l1, l2), lambda i: (0, 0))],
        out_specs=(pl.BlockSpec((h, l2), lambda i: (i, 0)),
                   pl.BlockSpec((None, 8, 2 * l2), lambda i: (i, 0, 0))),
        compiler_params=pltpu.CompilerParams(
            dimension_semantics=("parallel",),
            vmem_limit_bytes=_VMEM_LIMIT),
    )(xf2, w1s_big, sh1_vec, w2_stack)

    st = jnp.sum(stats2, axis=(0, 1))                 # (2*W*Cout,)
    s2 = st[:l2].reshape(w, cout).sum(0)
    q2 = st[l2:].reshape(w, cout).sum(0)
    mean2 = s2 / p_count
    var2 = jnp.maximum(q2 / p_count - mean2 * mean2, 0.0)
    scale2 = g2 * lax.rsqrt(var2 + _BN_EPS)
    shift2 = be2 - mean2 * scale2

    # --- pass 3: BN2 + ReLU + residual on 8-row-packed (512-lane) slabs ------
    rows3 = (n * h) // 8
    lp = 8 * l2
    rt3 = min(rows3, 512)
    assert rows3 % rt3 == 0   # TODO(synk): handle ragged last tiles
    t3 = rows3 // rt3
    y2p = y2.reshape(rows3, lp)                       # free (contiguous) reshape
    xres = xf2.reshape(rows3, 8 * l0)                 # free (contiguous) reshape
    scale_vec = jnp.tile(scale2, 8 * w).reshape(1, lp)
    shift_vec = jnp.tile(shift2, 8 * w).reshape(1, lp)

    outp = pl.pallas_call(
        _bn2_relu_residual_kernel,
        out_shape=jax.ShapeDtypeStruct((rows3, lp), f32),
        grid=(t3,),
        in_specs=[pl.BlockSpec((rt3, lp), lambda i: (i, 0)),
                  pl.BlockSpec((rt3, lp), lambda i: (i, 0)),
                  pl.BlockSpec((1, lp), lambda i: (0, 0)),
                  pl.BlockSpec((1, lp), lambda i: (0, 0))],
        out_specs=pl.BlockSpec((rt3, lp), lambda i: (i, 0)),
        input_output_aliases={0: 0},                  # reuse y2's HBM buffer
        compiler_params=pltpu.CompilerParams(
            dimension_semantics=("parallel",),
            vmem_limit_bytes=_VMEM_LIMIT),
    )(y2p, xres, scale_vec, shift_vec)

    return jnp.transpose(outp.reshape(n, h, w, cout), (0, 3, 1, 2))


# ---------------------------------------------------------------------------
# Deterministic parameter construction (BottleneckBlock(ch_in, ch_out, 0.5))
# ---------------------------------------------------------------------------
def make_params(key, ch_in, ch_out, expansion=0.5):
    ch_hidden = int(ch_in * expansion)
    ks = jax.random.split(key, 8)
    return {
        "conv1_w": jax.random.normal(ks[0], (ch_hidden, ch_in, 1, 1), jnp.float32) * 0.2,
        "conv1_b": jax.random.normal(ks[1], (ch_hidden,), jnp.float32) * 0.1,
        "bn1_g": 1.0 + 0.1 * jax.random.normal(ks[2], (ch_hidden,), jnp.float32),
        "bn1_b": 0.1 * jax.random.normal(ks[3], (ch_hidden,), jnp.float32),
        "conv2_w": jax.random.normal(ks[4], (ch_out, ch_hidden, 3, 3), jnp.float32) * 0.2,
        "conv2_b": jax.random.normal(ks[5], (ch_out,), jnp.float32) * 0.1,
        "bn2_g": 1.0 + 0.1 * jax.random.normal(ks[6], (ch_out,), jnp.float32),
        "bn2_b": 0.1 * jax.random.normal(ks[7], (ch_out,), jnp.float32),
    }


# ---------------------------------------------------------------------------
# Pure-JAX reference (training-mode BN batch stats, biases included, f32)
# ---------------------------------------------------------------------------
def reference_forward(x_nchw, params):
    def bn(y, gamma, beta):
        mean = jnp.mean(y, axis=(0, 2, 3), keepdims=True)
        var = jnp.mean(jnp.square(y - mean), axis=(0, 2, 3), keepdims=True)
        return ((y - mean) * lax.rsqrt(var + _BN_EPS)
                * gamma.reshape(1, -1, 1, 1) + beta.reshape(1, -1, 1, 1))

    w1_t, w2_t = params["conv1_w"], params["conv2_w"]
    dn1 = lax.conv_dimension_numbers(x_nchw.shape, w1_t.shape,
                                     ("NCHW", "OIHW", "NCHW"))
    y = lax.conv_general_dilated(x_nchw, w1_t, (1, 1), "VALID",
                                 dimension_numbers=dn1)
    y = y + params["conv1_b"].reshape(1, -1, 1, 1)
    y = jnp.maximum(bn(y, params["bn1_g"], params["bn1_b"]), 0.0)

    dn2 = lax.conv_dimension_numbers(y.shape, w2_t.shape,
                                     ("NCHW", "OIHW", "NCHW"))
    z = lax.conv_general_dilated(y, w2_t, (1, 1), ((1, 1), (1, 1)),
                                 dimension_numbers=dn2)
    z = z + params["conv2_b"].reshape(1, -1, 1, 1)
    z = jnp.maximum(bn(z, params["bn2_g"], params["bn2_b"]), 0.0)
    return x_nchw + z


# ---------------------------------------------------------------------------
if __name__ == "__main__":
    key = jax.random.PRNGKey(0)
    k_x, k_p = jax.random.split(key)

    N, C, H, W = 2, 4, 16, 16            # ch_in == ch_out (required by residual)
    x = jax.random.normal(k_x, (N, C, H, W), jnp.float32)
    params = make_params(k_p, ch_in=C, ch_out=C, expansion=0.5)

    out = jax.block_until_ready(bottleneck_forward(x, params))

    assert out.shape == (N, C, H, W), out.shape
    assert bool(jnp.all(jnp.isfinite(out)))

    ref = reference_forward(x, params)
    max_err = float(jnp.max(jnp.abs(out - ref)))
    # tolerance sized for bf16 MXU operands (f32 accumulation / BN math)
    assert bool(jnp.allclose(out, ref, atol=8e-2, rtol=8e-2)), max_err

    print("KERNEL_OK")
</pallas_src>

<mosaic_0001>
module attributes {stable_mosaic.version = 11 : i64} {
  func.func @_x_stats_kernel(%arg0: i32, %arg1: memref<32x64xbf16, #tpu.memory_space<vmem>>, %arg2: memref<1x72x64xf32, #tpu.memory_space<vmem>>) attributes {dimension_semantics = [#tpu.dimension_semantics<parallel>], iteration_bounds = array<i64: 1>, scalar_prefetch = 0 : i64, scratch_operands = 0 : i64, tpu.core_type = #tpu.core_type<tc>, window_params = [{transform_indices = @transform_0, window_bounds = array<i64: 32, 64>}, {transform_indices = @transform_1, window_bounds = array<i64: 1, 72, 64>}]} {
    %c0 = arith.constant 0 : index
    %c0_0 = arith.constant 0 : index
    %0 = vector.load %arg1[%c0, %c0_0] : memref<32x64xbf16, #tpu.memory_space<vmem>>, vector<32x64xbf16>
    %1 = arith.extf %0 : vector<32x64xbf16> to vector<32x64xf32>
    %cst = arith.constant 1.000000e+00 : f32
    %2 = vector.broadcast %cst : f32 to vector<32x8xf32>
    %3 = tpu.concatenate %1, %2 in 1 : vector<32x64xf32>, vector<32x8xf32> -> vector<32x72xf32>
    %cst_1 = arith.constant dense<0.000000e+00> : vector<72x64xf32>
    %4 = tpu.matmul %3, %1, %cst_1 {dimension_numbers = #tpu.dot_dimension_numbers<[0], [0], [1], [1], [0, 1, 1, 1], [], []>} : vector<32x72xf32>, vector<32x64xf32>, vector<72x64xf32> -> vector<72x64xf32>
    %c0_2 = arith.constant 0 : index
    %c0_3 = arith.constant 0 : index
    %c0_4 = arith.constant 0 : index
    %5 = vector.load %arg2[%c0_2, %c0_3, %c0_4] : memref<1x72x64xf32, #tpu.memory_space<vmem>>, vector<1x72x64xf32>
    %6 = vector.shape_cast %5 : vector<1x72x64xf32> to vector<72x64xf32>
    %7 = vector.shape_cast %4 : vector<72x64xf32> to vector<1x72x64xf32>
    tpu.vector_store %arg2[%c0_2, %c0_3, %c0_4], %7 {strides = array<i32>} : memref<1x72x64xf32, #tpu.memory_space<vmem>>, vector<1x72x64xf32>,
    return
  }
  func.func @transform_0(%arg0: i32) -> (i32, i32) {
    %c0_i32 = arith.constant 0 : i32
    %c0_i32_0 = arith.constant 0 : i32
    return %arg0, %c0_i32 : i32, i32
  }
  func.func @transform_1(%arg0: i32) -> (i32, i32, i32) {
    %c0_i32 = arith.constant 0 : i32
    %c0_i32_0 = arith.constant 0 : i32
    %c0_i32_1 = arith.constant 0 : i32
    return %arg0, %c0_i32, %c0_i32_0 : i32, i32, i32
  }
}

module attributes {stable_mosaic.version = 11 : i64} {
  func.func @kernel(%arg0: i32, %arg1: memref<16x64xbf16, #tpu.memory_space<vmem>>, %arg2: memref<64x32xbf16, #tpu.memory_space<vmem>>, %arg3: memref<1x32xf32, #tpu.memory_space<vmem>>, %arg4: memref<96x64xbf16, #tpu.memory_space<vmem>>, %arg5: memref<16x64xf32, #tpu.memory_space<vmem>>, %arg6: memref<1x8x128xf32, #tpu.memory_space<vmem>>) attributes {dimension_semantics = [#tpu.dimension_semantics<parallel>], iteration_bounds = array<i64: 2>, scalar_prefetch = 0 : i64, scratch_operands = 0 : i64, tpu.core_type = #tpu.core_type<tc>, window_params = [{transform_indices = @transform_0, window_bounds = array<i64: 16, 64>}, {pipeline_mode = #tpu.pipeline_mode<synchronous>, transform_indices = @transform_1, window_bounds = array<i64: 64, 32>}, {pipeline_mode = #tpu.pipeline_mode<synchronous>, transform_indices = @transform_2, window_bounds = array<i64: 1, 32>}, {pipeline_mode = #tpu.pipeline_mode<synchronous>, transform_indices = @transform_3, window_bounds = array<i64: 96, 64>}, {transform_indices = @transform_4, window_bounds = array<i64: 16, 64>}, {transform_indices = @transform_5, window_bounds = array<i64: 1, 8, 128>}]} {
    %c0 = arith.constant 0 : index
    %c0_0 = arith.constant 0 : index
    %0 = vector.load %arg1[%c0, %c0_0] : memref<16x64xbf16, #tpu.memory_space<vmem>>, vector<16x64xbf16>
    %c0_1 = arith.constant 0 : index
    %c0_2 = arith.constant 0 : index
    %1 = vector.load %arg2[%c0_1, %c0_2] : memref<64x32xbf16, #tpu.memory_space<vmem>>, vector<64x32xbf16>
    %cst = arith.constant dense<0.000000e+00> : vector<16x32xf32>
    %2 = tpu.matmul %0, %1, %cst {dimension_numbers = #tpu.dot_dimension_numbers<[1], [0], [0], [1], [0, 0, 1, 1], [], []>} : vector<16x64xbf16>, vector<64x32xbf16>, vector<16x32xf32> -> vector<16x32xf32>
    %c0_3 = arith.constant 0 : index
    %c0_4 = arith.constant 0 : index
    %3 = vector.load %arg3[%c0_3, %c0_4] : memref<1x32xf32, #tpu.memory_space<vmem>>, vector<1x32xf32>
    %4 = vector.broadcast %3 : vector<1x32xf32> to vector<16x32xf32>
    %5 = arith.addf %2, %4 : vector<16x32xf32>
    %cst_5 = arith.constant 0.000000e+00 : f32
    %6 = vector.broadcast %cst_5 : f32 to vector<16x32xf32>
    %7 = arith.maximumf %5, %6 : vector<16x32xf32>
    %cst_6 = arith.constant 0.000000e+00 : f32
    %8 = vector.broadcast %cst_6 : f32 to vector<1x32xf32>
    %9 = tpu.concatenate %8, %7, %8 in 0 : vector<1x32xf32>, vector<16x32xf32>, vector<1x32xf32> -> vector<18x32xf32>
    %10 = vector.extract_strided_slice %9 {offsets = [0, 0], sizes = [16, 32], strides = [1, 1]} : vector<18x32xf32> to vector<16x32xf32>
    %11 = vector.extract_strided_slice %9 {offsets = [1, 0], sizes = [16, 32], strides = [1, 1]} : vector<18x32xf32> to vector<16x32xf32>
    %12 = vector.extract_strided_slice %9 {offsets = [2, 0], sizes = [16, 32], strides = [1, 1]} : vector<18x32xf32> to vector<16x32xf32>
    %13 = tpu.concatenate %10, %11, %12 in 1 : vector<16x32xf32>, vector<16x32xf32>, vector<16x32xf32> -> vector<16x96xf32>
    %14 = arith.truncf %13 : vector<16x96xf32> to vector<16x96xbf16>
    %c0_7 = arith.constant 0 : index
    %c0_8 = arith.constant 0 : index
    %15 = vector.load %arg4[%c0_7, %c0_8] : memref<96x64xbf16, #tpu.memory_space<vmem>>, vector<96x64xbf16>
    %cst_9 = arith.constant dense<0.000000e+00> : vector<16x64xf32>
    %16 = tpu.matmul %14, %15, %cst_9 {dimension_numbers = #tpu.dot_dimension_numbers<[1], [0], [0], [1], [0, 0, 1, 1], [], []>} : vector<16x96xbf16>, vector<96x64xbf16>, vector<16x64xf32> -> vector<16x64xf32>
    %c0_10 = arith.constant 0 : index
    %c0_11 = arith.constant 0 : index
    %17 = vector.load %arg5[%c0_10, %c0_11] : memref<16x64xf32, #tpu.memory_space<vmem>>, vector<16x64xf32>
    tpu.vector_store %arg5[%c0_10, %c0_11], %16 {strides = array<i32>} : memref<16x64xf32, #tpu.memory_space<vmem>>, vector<16x64xf32>,
    %18 = vector.shape_cast %16 : vector<16x64xf32> to vector<2x8x64xf32>
    %cst_12 = arith.constant dense<0.000000e+00> : vector<8x64xf32>
    %19 = vector.multi_reduction <add>, %18, %cst_12 [0] : vector<2x8x64xf32> to vector<8x64xf32>
    %20 = arith.mulf %16, %16 : vector<16x64xf32>
    %21 = vector.shape_cast %20 : vector<16x64xf32> to vector<2x8x64xf32>
    %cst_13 = arith.constant dense<0.000000e+00> : vector<8x64xf32>
    %22 = vector.multi_reduction <add>, %21, %cst_13 [0] : vector<2x8x64xf32> to vector<8x64xf32>
    %23 = tpu.concatenate %19, %22 in 1 : vector<8x64xf32>, vector<8x64xf32> -> vector<8x128xf32>
    %c0_14 = arith.constant 0 : index
    %c0_15 = arith.constant 0 : index
    %c0_16 = arith.constant 0 : index
    %24 = vector.load %arg6[%c0_14, %c0_15, %c0_16] : memref<1x8x128xf32, #tpu.memory_space<vmem>>, vector<1x8x128xf32>
    %25 = vector.shape_cast %24 : vector<1x8x128xf32> to vector<8x128xf32>
    %26 = vector.shape_cast %23 : vector<8x128xf32> to vector<1x8x128xf32>
    tpu.vector_store %arg6[%c0_14, %c0_15, %c0_16], %26 {strides = array<i32>} : memref<1x8x128xf32, #tpu.memory_space<vmem>>, vector<1x8x128xf32>,
    return
  }
  func.func @transform_0(%arg0: i32) -> (i32, i32) {
    %c0_i32 = arith.constant 0 : i32
    %c0_i32_0 = arith.constant 0 : i32
    return %arg0, %c0_i32 : i32, i32
  }
  func.func @transform_1(%arg0: i32) -> (i32, i32) {
    %c0_i32 = arith.constant 0 : i32
    %c0_i32_0 = arith.constant 0 : i32
    %c0_i32_1 = arith.constant 0 : i32
    return %c0_i32, %c0_i32_0 : i32, i32
  }
  func.func @transform_2(%arg0: i32) -> (i32, i32) {
    %c0_i32 = arith.constant 0 : i32
    %c0_i32_0 = arith.constant 0 : i32
    %c0_i32_1 = arith.constant 0 : i32
    return %c0_i32, %c0_i32_0 : i32, i32
  }
  func.func @transform_3(%arg0: i32) -> (i32, i32) {
    %c0_i32 = arith.constant 0 : i32
    %c0_i32_0 = arith.constant 0 : i32
    %c0_i32_1 = arith.constant 0 : i32
    return %c0_i32, %c0_i32_0 : i32, i32
  }
  func.func @transform_4(%arg0: i32) -> (i32, i32) {
    %c0_i32 = arith.constant 0 : i32
    %c0_i32_0 = arith.constant 0 : i32
    return %arg0, %c0_i32 : i32, i32
  }
  func.func @transform_5(%arg0: i32) -> (i32, i32, i32) {
    %c0_i32 = arith.constant 0 : i32
    %c0_i32_0 = arith.constant 0 : i32
    %c0_i32_1 = arith.constant 0 : i32
    return %arg0, %c0_i32, %c0_i32_0 : i32, i32, i32
  }
}

module attributes {stable_mosaic.version = 11 : i64} {
  func.func @_bn2_relu_residual_kernel(%arg0: i32, %arg1: memref<4x512xf32, #tpu.memory_space<vmem>>, %arg2: memref<4x512xbf16, #tpu.memory_space<vmem>>, %arg3: memref<1x512xf32, #tpu.memory_space<vmem>>, %arg4: memref<1x512xf32, #tpu.memory_space<vmem>>, %arg5: memref<4x512xf32, #tpu.memory_space<vmem>>) attributes {dimension_semantics = [#tpu.dimension_semantics<parallel>], iteration_bounds = array<i64: 1>, scalar_prefetch = 0 : i64, scratch_operands = 0 : i64, tpu.core_type = #tpu.core_type<tc>, window_params = [{transform_indices = @transform_0, window_bounds = array<i64: 4, 512>}, {transform_indices = @transform_1, window_bounds = array<i64: 4, 512>}, {pipeline_mode = #tpu.pipeline_mode<synchronous>, transform_indices = @transform_2, window_bounds = array<i64: 1, 512>}, {pipeline_mode = #tpu.pipeline_mode<synchronous>, transform_indices = @transform_3, window_bounds = array<i64: 1, 512>}, {transform_indices = @transform_4, window_bounds = array<i64: 4, 512>}]} {
    %c0 = arith.constant 0 : index
    %c0_0 = arith.constant 0 : index
    %0 = vector.load %arg2[%c0, %c0_0] : memref<4x512xbf16, #tpu.memory_space<vmem>>, vector<4x512xbf16>
    %1 = arith.extf %0 : vector<4x512xbf16> to vector<4x512xf32>
    %c0_1 = arith.constant 0 : index
    %c0_2 = arith.constant 0 : index
    %2 = vector.load %arg1[%c0_1, %c0_2] : memref<4x512xf32, #tpu.memory_space<vmem>>, vector<4x512xf32>
    %c0_3 = arith.constant 0 : index
    %c0_4 = arith.constant 0 : index
    %3 = vector.load %arg3[%c0_3, %c0_4] : memref<1x512xf32, #tpu.memory_space<vmem>>, vector<1x512xf32>
    %4 = vector.broadcast %3 : vector<1x512xf32> to vector<4x512xf32>
    %5 = arith.mulf %2, %4 : vector<4x512xf32>
    %c0_5 = arith.constant 0 : index
    %c0_6 = arith.constant 0 : index
    %6 = vector.load %arg4[%c0_5, %c0_6] : memref<1x512xf32, #tpu.memory_space<vmem>>, vector<1x512xf32>
    %7 = vector.broadcast %6 : vector<1x512xf32> to vector<4x512xf32>
    %8 = arith.addf %5, %7 : vector<4x512xf32>
    %cst = arith.constant 0.000000e+00 : f32
    %9 = vector.broadcast %cst : f32 to vector<4x512xf32>
    %10 = arith.maximumf %8, %9 : vector<4x512xf32>
    %11 = arith.addf %1, %10 : vector<4x512xf32>
    %c0_7 = arith.constant 0 : index
    %c0_8 = arith.constant 0 : index
    %12 = vector.load %arg5[%c0_7, %c0_8] : memref<4x512xf32, #tpu.memory_space<vmem>>, vector<4x512xf32>
    tpu.vector_store %arg5[%c0_7, %c0_8], %11 {strides = array<i32>} : memref<4x512xf32, #tpu.memory_space<vmem>>, vector<4x512xf32>,
    return
  }
  func.func @transform_0(%arg0: i32) -> (i32, i32) {
    %c0_i32 = arith.constant 0 : i32
    %c0_i32_0 = arith.constant 0 : i32
    return %arg0, %c0_i32 : i32, i32
  }
  func.func @transform_1(%arg0: i32) -> (i32, i32) {
    %c0_i32 = arith.constant 0 : i32
    %c0_i32_0 = arith.constant 0 : i32
    return %arg0, %c0_i32 : i32, i32
  }
  func.func @transform_2(%arg0: i32) -> (i32, i32) {
    %c0_i32 = arith.constant 0 : i32
    %c0_i32_0 = arith.constant 0 : i32
    %c0_i32_1 = arith.constant 0 : i32
    return %c0_i32, %c0_i32_0 : i32, i32
  }
  func.func @transform_3(%arg0: i32) -> (i32, i32) {
    %c0_i32 = arith.constant 0 : i32
    %c0_i32_0 = arith.constant 0 : i32
    %c0_i32_1 = arith.constant 0 : i32
    return %c0_i32, %c0_i32_0 : i32, i32
  }
  func.func @transform_4(%arg0: i32) -> (i32, i32) {
    %c0_i32 = arith.constant 0 : i32
    %c0_i32_0 = arith.constant 0 : i32
    return %arg0, %c0_i32 : i32, i32
  }
}

</mosaic_0001>

<llo_original>
// kernel: squeeze.12
$region0: #{squeeze.12}
  %s0 = inlined_call_operand.vmem [shape: f32[64], index: 0, kind: input, shape index: {}]
  %s1 = inlined_call_operand.vmem [shape: f32[16,4], index: 1, kind: output, shape index: {}]
  $region1: #{squeeze.12} parent=0
    #allocation0 [shape = 'u8[4096]{0}', space=vmem, size = 0x1000, scoped, tag = 'scoped mem for input reshape']
    %s3 = ssub.s32 2, 1
    %v4 = vld [vmem:[%s0] sm:%s3]
    %5 = vst [vmem:[#allocation0] sm:%s3] %v4
    %v6 = vld [vmem:[#allocation0] sm:$0x1]
    %vm7 = vcmask 31744
    %8 = vst.msk [vmem:[%s1] sm:$0x1] %vm7, %v6
    %v9 = vld [vmem:[#allocation0] sm:$0x1]
    %10 = vrot.lane.b32.xlu0 %v9, 124
    %v11 = vpop.permute.xlu0 %10
    %vm12 = vcmask 31744
    %s13 = scalar_lea.vmem %s1, 1
    %14 = vst.msk [vmem:[%s13] sm:$0x1] %vm12, %v11
    %v15 = vld [vmem:[#allocation0] sm:$0x1]
    %16 = vrot.lane.b32.xlu0 %v15, 120
    %v17 = vpop.permute.xlu0 %16
    %vm18 = vcmask 31744
    %s19 = scalar_lea.vmem %s1, 2
    %20 = vst.msk [vmem:[%s19] sm:$0x1] %vm18, %v17
    %v21 = vld [vmem:[#allocation0] sm:$0x1]
    %22 = vrot.lane.b32.xlu0 %v21, 116
    %v23 = vpop.permute.xlu0 %22
    %vm24 = vcmask 31744
    %s25 = scalar_lea.vmem %s1, 3
    %26 = vst.msk [vmem:[%s25] sm:$0x1] %vm24, %v23
    %v27 = vld [vmem:[#allocation0] sm:$0x1]
    %28 = vrot.lane.b32.xlu0 %v27, 112
    %v29 = vpop.permute.xlu0 %28
    %vm30 = vcmask 31744
    %s31 = scalar_lea.vmem %s1, 4
    %32 = vst.msk [vmem:[%s31] sm:$0x1] %vm30, %v29
    %v33 = vld [vmem:[#allocation0] sm:$0x1]
    %34 = vrot.lane.b32.xlu0 %v33, 108
    %v35 = vpop.permute.xlu0 %34
    %vm36 = vcmask 31744
    %s37 = scalar_lea.vmem %s1, 5
    %38 = vst.msk [vmem:[%s37] sm:$0x1] %vm36, %v35
    %v39 = vld [vmem:[#allocation0] sm:$0x1]
    %40 = vrot.lane.b32.xlu0 %v39, 104
    %v41 = vpop.permute.xlu0 %40
    %vm42 = vcmask 31744
    %s43 = scalar_lea.vmem %s1, 6
    %44 = vst.msk [vmem:[%s43] sm:$0x1] %vm42, %v41
    %v45 = vld [vmem:[#allocation0] sm:$0x1]
    %46 = vrot.lane.b32.xlu0 %v45, 100
    %v47 = vpop.permute.xlu0 %46
    %vm48 = vcmask 31744
    %s49 = scalar_lea.vmem %s1, 7
    %50 = vst.msk [vmem:[%s49] sm:$0x1] %vm48, %v47
    %v51 = vld [vmem:[#allocation0] sm:$0x1]
    %52 = vrot.lane.b32.xlu0 %v51, 96
    %v53 = vpop.permute.xlu0 %52
    %vm54 = vcmask 31744
    %s55 = scalar_lea.vmem %s1, 8
    %56 = vst.msk [vmem:[%s55] sm:$0x1] %vm54, %v53
    %v57 = vld [vmem:[#allocation0] sm:$0x1]
    %58 = vrot.lane.b32.xlu0 %v57, 92
    %v59 = vpop.permute.xlu0 %58
    %vm60 = vcmask 31744
    %s61 = scalar_lea.vmem %s1, 9
    %62 = vst.msk [vmem:[%s61] sm:$0x1] %vm60, %v59
    %v63 = vld [vmem:[#allocation0] sm:$0x1]
    %64 = vrot.lane.b32.xlu0 %v63, 88
    %v65 = vpop.permute.xlu0 %64
    %vm66 = vcmask 31744
    %s67 = scalar_lea.vmem %s1, 10
    %68 = vst.msk [vmem:[%s67] sm:$0x1] %vm66, %v65
    %v69 = vld [vmem:[#allocation0] sm:$0x1]
    %70 = vrot.lane.b32.xlu0 %v69, 84
    %v71 = vpop.permute.xlu0 %70
    %vm72 = vcmask 31744
    %s73 = scalar_lea.vmem %s1, 11
    %74 = vst.msk [vmem:[%s73] sm:$0x1] %vm72, %v71
    %v75 = vld [vmem:[#allocation0] sm:$0x1]
    %76 = vrot.lane.b32.xlu0 %v75, 80
    %v77 = vpop.permute.xlu0 %76
    %vm78 = vcmask 31744
    %s79 = scalar_lea.vmem %s1, 12
    %80 = vst.msk [vmem:[%s79] sm:$0x1] %vm78, %v77
    %v81 = vld [vmem:[#allocation0] sm:$0x1]
    %82 = vrot.lane.b32.xlu0 %v81, 76
    %v83 = vpop.permute.xlu0 %82
    %vm84 = vcmask 31744
    %s85 = scalar_lea.vmem %s1, 13
    %86 = vst.msk [vmem:[%s85] sm:$0x1] %vm84, %v83
    %v87 = vld [vmem:[#allocation0] sm:$0x1]
    %88 = vrot.lane.b32.xlu0 %v87, 72
    %v89 = vpop.permute.xlu0 %88
    %vm90 = vcmask 31744
    %s91 = scalar_lea.vmem %s1, 14
    %92 = vst.msk [vmem:[%s91] sm:$0x1] %vm90, %v89
    %v93 = vld [vmem:[#allocation0] sm:$0x1]
    %94 = vrot.lane.b32.xlu0 %v93, 68
    %v95 = vpop.permute.xlu0 %94
    %vm96 = vcmask 31744
    %s97 = scalar_lea.vmem %s1, 15
    %98 = vst.msk [vmem:[%s97] sm:$0x1] %vm96, %v95

// kernel: bottleneck_forward.3
$region0: #{bottleneck_forward.3}
  #allocation0 [shape = 'u32[]', space=smem, size = 0x4, offset = 0x4, fixed_abs, tag = 'smem constant byte address 0x4 - core index']
  #allocation1 [shape = 'u32[72,128]{1,0:T(1,128)}', space=vmem, size = 0x9000, scoped, tag = 'internal scratch']
  %s0 = inlined_call_operand.vmem [shape: bf16[32,64], index: 0, kind: input, shape index: {}]
  %s1 = inlined_call_operand.vmem [shape: f32[1,72,64], index: 1, kind: output, shape index: {}]
  %s2 = sld [smem:[#allocation0]]
  $region14: #{bottleneck_forward.3} parent=0
    _
  %s4 = ssub.s32 1, %s2
  %s5 = scalar_select 0, %s4, %s2
  // Predicated region
  $region2: #{bottleneck_forward.3} parent=0 // pred_check
    _
  $region3: #{bottleneck_forward.3} parent=0 // pred_check_branch
    %7 = sbr.rel (0) target = $region5
  $region4: #{bottleneck_forward.3} parent=0 // pred_region
    _
  $region5: #{bottleneck_forward.3} parent=0 // pred_fallthru
    _
  %v8 = vld [vmem:[%s0] sm:$0xf]
  %v9 = vld [vmem:[%s0 + $0x4] sm:$0xf]
  %v10 = vld [vmem:[%s0 + $0x8] sm:$0xf]
  %v11 = vld [vmem:[%s0 + $0xc] sm:$0xf]
  %v12 = vunpack.c.l.bf16 %v8
  %v13 = vunpack.c.l.bf16 %v9
  %v14 = vunpack.c.l.bf16 %v10
  %v15 = vunpack.c.l.bf16 %v11
  %vm16 = vcmask 523264
  %v17 = vsel %vm16, %v12, 1.0
  %v18 = vsel %vm16, %v13, 1.0
  %v19 = vsel %vm16, %v14, 1.0
  %v20 = vsel %vm16, %v15, 1.0
  %21 = vxpose.xlu0.b32.start [1/16] %v17, 128
  %22 = vxpose.xlu0.b32.cont [2/16] %v18, 128
  %23 = vxpose.xlu0.b32.cont [3/16] %v19, 128
  %24 = vxpose.xlu0.b32.cont [4/16] %v20, 128
  %25 = vxpose.xlu0.b32.cont [5/16] 0.0, 128
  %26 = vxpose.xlu0.b32.cont [6/16] 0.0, 128
  %27 = vxpose.xlu0.b32.cont [7/16] 0.0, 128
  %28 = vxpose.xlu0.b32.cont [8/16] 0.0, 128
  %29 = vxpose.xlu0.b32.cont [9/16] 0.0, 128
  %30 = vxpose.xlu0.b32.cont [10/16] 0.0, 128
  %31 = vxpose.xlu0.b32.cont [11/16] 0.0, 128
  %32 = vxpose.xlu0.b32.cont [12/16] 0.0, 128
  %33 = vxpose.xlu0.b32.cont [13/16] 0.0, 128
  %34 = vxpose.xlu0.b32.cont [14/16] 0.0, 128
  %35 = vxpose.xlu0.b32.cont [15/16] 0.0, 128
  %36 = vxpose.xlu0.b32.end [16/16] 0.0, 128
  %v37 = vpop.trf.xlu0
  %v38 = vpop.trf.xlu0
  %v39 = vpop.trf.xlu0
  %v40 = vpop.trf.xlu0
  %v41 = vpop.trf.xlu0
  %v42 = vpop.trf.xlu0
  %v43 = vpop.trf.xlu0
  %v44 = vpop.trf.xlu0
  %v45 = vpop.trf.xlu0
  %v46 = vpop.trf.xlu0
  %v47 = vpop.trf.xlu0
  %v48 = vpop.trf.xlu0
  %v49 = vpop.trf.xlu0
  %v50 = vpop.trf.xlu0
  %v51 = vpop.trf.xlu0
  %v52 = vpop.trf.xlu0
  %vm53 = vcmask 261120
  %v55 = vsel %vm53, %v37, 0
  %v58 = vsel %vm53, %v38, 0
  %v61 = vsel %vm53, %v39, 0
  %v64 = vsel %vm53, %v40, 0
  %v67 = vsel %vm53, %v41, 0
  %v70 = vsel %vm53, %v42, 0
  %v73 = vsel %vm53, %v43, 0
  %v76 = vsel %vm53, %v44, 0
  %v79 = vsel %vm53, %v45, 0
  %81 = vmatpush.msra.mxu0 0.0
  %82 = vmatpush.msra.mxu0 0.0
  %83 = vmatpush.msra.mxu0 0.0
  %84 = vmatpush.msra.mxu0 0.0
  %85 = vmatpush.msra.mxu0 0.0
  %86 = vmatpush.msra.mxu0 0.0
  %87 = vmatpush.msra.mxu0 0.0
  %88 = vmatpush.msra.mxu0 0.0
  %89 = vmatpush.msra.mxu0 0.0
  %90 = vmatpush.msra.mxu0 0.0
  %91 = vmatpush.msra.mxu0 0.0
  %92 = vmatpush.msra.mxu0 0.0
  %93 = vmatpush.msra.mxu0 %v15
  %94 = vmatpush.msra.mxu0 %v14
  %95 = vmatpush.msra.mxu0 %v13
  %96 = vmatpush.msra.mxu0 %v12
  %97 = vmatmul.f32.gmra.mxu0 %v55
  %v98 = vpop.f32.mrf.mxu0
  %v99 = vadd.f32 0.0, %v98
  %100 = vmatmul.f32.gmra.mxu0 %v58
  %v101 = vpop.f32.mrf.mxu0
  %v102 = vadd.f32 0.0, %v101
  %103 = vmatmul.f32.gmra.mxu0 %v61
  %v104 = vpop.f32.mrf.mxu0
  %v105 = vadd.f32 0.0, %v104
  %106 = vmatmul.f32.gmra.mxu0 %v64
  %v107 = vpop.f32.mrf.mxu0
  %v108 = vadd.f32 0.0, %v107
  %109 = vmatmul.f32.gmra.mxu0 %v67
  %v110 = vpop.f32.mrf.mxu0
  %v111 = vadd.f32 0.0, %v110
  %112 = vmatmul.f32.gmra.mxu0 %v70
  %v113 = vpop.f32.mrf.mxu0
  %v114 = vadd.f32 0.0, %v113
  %115 = vmatmul.f32.gmra.mxu0 %v73
  %v116 = vpop.f32.mrf.mxu0
  %v117 = vadd.f32 0.0, %v116
  %118 = vmatmul.f32.gmra.mxu0 %v76
  %v119 = vpop.f32.mrf.mxu0
  %v120 = vadd.f32 0.0, %v119
  %121 = vmatmul.f32.gmra.mxu0 %v79
  %v122 = vpop.f32.mrf.mxu0
  %v123 = vadd.f32 0.0, %v122
  %124 = vdwg.mxu0
  %125 = vst.msk [vmem:[%s1] sm:$0xff] %vm16, %v99
  %126 = vst.msk [vmem:[%s1 + $0x8] sm:$0xff] %vm16, %v102
  %127 = vst.msk [vmem:[%s1 + $0x10] sm:$0xff] %vm16, %v105
  %128 = vst.msk [vmem:[%s1 + $0x18] sm:$0xff] %vm16, %v108
  %129 = vst.msk [vmem:[%s1 + $0x20] sm:$0xff] %vm16, %v111
  %130 = vst.msk [vmem:[%s1 + $0x28] sm:$0xff] %vm16, %v114
  %131 = vst.msk [vmem:[%s1 + $0x30] sm:$0xff] %vm16, %v117
  %132 = vst.msk [vmem:[%s1 + $0x38] sm:$0xff] %vm16, %v120
  %133 = vst.msk [vmem:[%s1 + $0x40] sm:$0xff] %vm16, %v123
  // Predicated region
  $region6: #{bottleneck_forward.3} parent=0 // pred_check
    _
  $region7: #{bottleneck_forward.3} parent=0 // pred_check_branch
    %135 = sbr.rel (0) target = $region9
  $region8: #{bottleneck_forward.3} parent=0 // pred_region
    _
  $region9: #{bottleneck_forward.3} parent=0 // pred_fallthru
    _
  // Predicated region
  $region10: #{bottleneck_forward.3} parent=0 // pred_check
    _
  $region11: #{bottleneck_forward.3} parent=0 // pred_check_branch
    %137 = sbr.rel (0) target = $region13
  $region12: #{bottleneck_forward.3} parent=0 // pred_region
    _
  $region13: #{bottleneck_forward.3} parent=0 // pred_fallthru
    _

// kernel: tile.18
$region0: #{tile.18}
  #allocation0 [shape = 's32[1]{0}', space=sflag, size = 0x4, scoped, tag = 'scoped memory for tile.18']
  %s0 = inlined_call_operand.vmem [shape: f32[2], index: 0, kind: input, shape index: {}]
  %s1 = inlined_call_operand.vmem [shape: f32[16,2], index: 1, kind: output, shape index: {}]
  // Predicated region
  $region2: #{tile.18} parent=0 // pred_check
    _
  $region3: #{tile.18} parent=0 // pred_check_branch
    %3 = sbr.rel (0) target = $region5
  $region4: #{tile.18} parent=0 // pred_region
    _
  $region5: #{tile.18} parent=0 // pred_fallthru
    _
  %v4 = vld [vmem:[%s0] ss:$0 sm:$0xff]
  %5 = vst [vmem:[%s1] sm:$0xff] %v4
  %s6 = scalar_lea.vmem %s1, 8
  %7 = vst [vmem:[%s6] sm:$0xff] %v4

// kernel: tile.19
$region0: #{tile.19}
  %s0 = inlined_call_operand.vmem [shape: f32[16,2], index: 0, kind: input, shape index: {}]
  %s1 = inlined_call_operand.vmem [shape: f32[1,32], index: 1, kind: output, shape index: {}]
  $region1: #{tile.19} parent=0
    #allocation0 [shape = 'u8[4096]{0}', space=vmem, size = 0x1000, scoped, tag = 'scoped mem for output reshape']
    %v2 = vld [vmem:[%s0] sm:$0x1]
    %vm3 = vcmask 15360
    %4 = vst.msk [vmem:[#allocation0] sm:$0x1] %vm3, %v2
    %s5 = scalar_lea.vmem %s0, 15
    %v6 = vld [vmem:[%s5] sm:$0x1]
    %7 = vrot.lane.b32.xlu0 %v6, 30
    %v8 = vpop.permute.xlu0 %7
    %vm9 = vcmask 261360
    %10 = vst.msk [vmem:[#allocation0] sm:$0x1] %vm9, %v8
    %s11 = scalar_lea.vmem %s0, 14
    %v12 = vld [vmem:[%s11] sm:$0x1]
    %13 = vrot.lane.b32.xlu0 %v12, 28
    %v14 = vpop.permute.xlu0 %13
    %vm15 = vcmask 244960
    %16 = vst.msk [vmem:[#allocation0] sm:$0x1] %vm15, %v14
    %s17 = scalar_lea.vmem %s0, 13
    %v18 = vld [vmem:[%s17] sm:$0x1]
    %19 = vrot.lane.b32.xlu0 %v18, 26
    %v20 = vpop.permute.xlu0 %19
    %vm21 = vcmask 228560
    %22 = vst.msk [vmem:[#allocation0] sm:$0x1] %vm21, %v20
    %s23 = scalar_lea.vmem %s0, 12
    %v24 = vld [vmem:[%s23] sm:$0x1]
    %25 = vrot.lane.b32.xlu0 %v24, 24
    %v26 = vpop.permute.xlu0 %25
    %vm27 = vcmask 212160
    %28 = vst.msk [vmem:[#allocation0] sm:$0x1] %vm27, %v26
    %s29 = scalar_lea.vmem %s0, 11
    %v30 = vld [vmem:[%s29] sm:$0x1]
    %31 = vrot.lane.b32.xlu0 %v30, 22
    %v32 = vpop.permute.xlu0 %31
    %vm33 = vcmask 195760
    %34 = vst.msk [vmem:[#allocation0] sm:$0x1] %vm33, %v32
    %s35 = scalar_lea.vmem %s0, 10
    %v36 = vld [vmem:[%s35] sm:$0x1]
    %37 = vrot.lane.b32.xlu0 %v36, 20
    %v38 = vpop.permute.xlu0 %37
    %vm39 = vcmask 179360
    %40 = vst.msk [vmem:[#allocation0] sm:$0x1] %vm39, %v38
    %s41 = scalar_lea.vmem %s0, 9
    %v42 = vld [vmem:[%s41] sm:$0x1]
    %43 = vrot.lane.b32.xlu0 %v42, 18
    %v44 = vpop.permute.xlu0 %43
    %vm45 = vcmask 162960
    %46 = vst.msk [vmem:[#allocation0] sm:$0x1] %vm45, %v44
    %s47 = scalar_lea.vmem %s0, 8
    %v48 = vld [vmem:[%s47] sm:$0x1]
    %49 = vrot.lane.b32.xlu0 %v48, 16
    %v50 = vpop.permute.xlu0 %49
    %vm51 = vcmask 146560
    %52 = vst.msk [vmem:[#allocation0] sm:$0x1] %vm51, %v50
    %s53 = scalar_lea.vmem %s0, 7
    %v54 = vld [vmem:[%s53] sm:$0x1]
    %55 = vrot.lane.b32.xlu0 %v54, 14
    %v56 = vpop.permute.xlu0 %55
    %vm57 = vcmask 130160
    %58 = vst.msk [vmem:[#allocation0] sm:$0x1] %vm57, %v56
    %s59 = scalar_lea.vmem %s0, 6
    %v60 = vld [vmem:[%s59] sm:$0x1]
    %61 = vrot.lane.b32.xlu0 %v60, 12
    %v62 = vpop.permute.xlu0 %61
    %vm63 = vcmask 113760
    %64 = vst.msk [vmem:[#allocation0] sm:$0x1] %vm63, %v62
    %s65 = scalar_lea.vmem %s0, 5
    %v66 = vld [vmem:[%s65] sm:$0x1]
    %67 = vrot.lane.b32.xlu0 %v66, 10
    %v68 = vpop.permute.xlu0 %67
    %vm69 = vcmask 97360
    %70 = vst.msk [vmem:[#allocation0] sm:$0x1] %vm69, %v68
    %s71 = scalar_lea.vmem %s0, 4
    %v72 = vld [vmem:[%s71] sm:$0x1]
    %73 = vrot.lane.b32.xlu0 %v72, 8
    %v74 = vpop.permute.xlu0 %73
    %vm75 = vcmask 80960
    %76 = vst.msk [vmem:[#allocation0] sm:$0x1] %vm75, %v74
    %s77 = scalar_lea.vmem %s0, 3
    %v78 = vld [vmem:[%s77] sm:$0x1]
    %79 = vrot.lane.b32.xlu0 %v78, 6
    %v80 = vpop.permute.xlu0 %79
    %vm81 = vcmask 64560
    %82 = vst.msk [vmem:[#allocation0] sm:$0x1] %vm81, %v80
    %s83 = scalar_lea.vmem %s0, 2
    %v84 = vld [vmem:[%s83] sm:$0x1]
    %85 = vrot.lane.b32.xlu0 %v84, 4
    %v86 = vpop.permute.xlu0 %85
    %vm87 = vcmask 48160
    %88 = vst.msk [vmem:[#allocation0] sm:$0x1] %vm87, %v86
    %s89 = scalar_lea.vmem %s0, 1
    %v90 = vld [vmem:[%s89] sm:$0x1]
    %91 = vrot.lane.b32.xlu0 %v90, 2
    %v92 = vpop.permute.xlu0 %91
    %vm93 = vcmask 31760
    %94 = vst.msk [vmem:[#allocation0] sm:$0x1] %vm93, %v92
    %s96 = ssub.s32 2, 1
    %v97 = vld [vmem:[#allocation0] sm:%s96]
    %s99 = ssub.s32 2, 1
    %100 = vst [vmem:[%s1] sm:%s99] %v97

// kernel: bottleneck_forward.4
$region0: #{bottleneck_forward.4}
  #allocation0 [shape = 'u32[]', space=smem, size = 0x4, offset = 0x4, fixed_abs, tag = 'smem constant byte address 0x4 - core index']
  #allocation1 [shape = 'u32[72,128]{1,0:T(1,128)}', space=vmem, size = 0x9000, scoped, tag = 'internal scratch']
  %s0 = inlined_call_operand.vmem [shape: bf16[32,64], index: 0, kind: input, shape index: {}]
  %s1 = inlined_call_operand.vmem [shape: bf16[64,32], index: 1, kind: input, shape index: {}]
  %s2 = inlined_call_operand.vmem [shape: f32[1,32], index: 2, kind: input, shape index: {}]
  %s3 = inlined_call_operand.vmem [shape: bf16[96,64], index: 3, kind: input, shape index: {}]
  %s4 = inlined_call_operand.vmem [shape: f32[32,64], index: 4, kind: output, shape index: {0}]
  %s5 = inlined_call_operand.vmem [shape: f32[2,8,128], index: 5, kind: output, shape index: {1}]
  %6 = xla_tuple %s4, %s5
  %s7 = sld [smem:[#allocation0]]
  $region57: #{bottleneck_forward.4} parent=0
    _
  %s9 = ssub.s32 1, %s7
  %s10 = scalar_select 0, %s9, %s7
  loop: start=0, step=1, limit=4
  $region2: #{bottleneck_forward.4} parent=0 // loop_pre_header
    _
  $region3: #{bottleneck_forward.4} parent=0 // loop_header
    %s12 = sphi 0, %s16
    %p13 = scmp.ge.s32.totalorder %s12, 4
    %s22 = sphi 0, %s24
    %s25 = sphi 0, %s22
    %s26 = sphi 0, %s25
    %s42 = sphi 0, %s26
    %s46 = sphi 0, %s46
    %s48 = sphi 0, %s46
    %s49 = sphi 0, %s48
    %s63 = sphi 0, %s49
    %s67 = sphi 0, %s67
    %s69 = sphi 0, %s67
    %s70 = sphi 0, %s69
    %s84 = sphi 0, %s70
    %s88 = sphi 0, %s88
    %s90 = sphi 0, %s88
    %s91 = sphi 0, %s90
    %s105 = sphi 0, %s91
    %s111 = sphi 0, %s113
    %s114 = sphi 0, %s111
    %s115 = sphi 0, %s114
    %s131 = sphi 0, %s115
    %s137 = sphi 0, %s139
    %s140 = sphi 0, %s137
    %s141 = sphi 0, %s140
    %s157 = sphi 0, %s141
  $region4: #{bottleneck_forward.4} parent=0 // loop_header_branch
    %15 = sbr.rel (%p13) target = $region8
  $region5: #{bottleneck_forward.4} parent=0 // loop_body
    %s17 = ssub.s32 %s12, 1
    %s18 = ssub.s32 %s12, 2
    %s19 = sadd.s32 %s12, 1
    %s20 = ssub.s32 %s12, %s19
    %p21 = scmp.eq.s32.totalorder %s20, 0
    %s23 = sadd.s32 %s22, 1
    %s24 = scalar_select %p21, %s22, %s23
    %p27 = pneg %p21
    %p28 = scmp.eq.s32.totalorder %s12, 1
    %p29 = por %p27, %p28
    %p30 = scmp.ne.s32.totalorder %s22, %s25
    %p31 = scmp.eq.s32.totalorder %s12, 0
    %p32 = por %p30, %p31
    %p33 = scmp.ne.s32.totalorder %s22, %s25
    %p34 = scmp.eq.s32.totalorder %s17, 1
    %p35 = por %p33, %p34
    %p36 = scmp.ne.s32.totalorder %s25, %s26
    %p37 = scmp.eq.s32.totalorder %s17, 0
    %p38 = por %p36, %p37
    %p39 = scmp.ne.s32.totalorder %s25, %s26
    %p40 = scmp.eq.s32.totalorder %s18, 1
    %p41 = por %p39, %p40
    %p43 = scmp.ne.s32.totalorder %s26, %s42
    %p44 = scmp.eq.s32.totalorder %s18, 0
    %p45 = por %p43, %p44
    %s47 = sadd.s32 %s46, 1
    %p50 = scmp.eq.s32.totalorder %s12, 1
    %p51 = scmp.ne.s32.totalorder %s46, %s48
    %p52 = scmp.eq.s32.totalorder %s12, 0
    %p53 = por %p51, %p52
    %p54 = scmp.ne.s32.totalorder %s46, %s48
    %p55 = scmp.eq.s32.totalorder %s17, 1
    %p56 = por %p54, %p55
    %p57 = scmp.ne.s32.totalorder %s48, %s49
    %p58 = scmp.eq.s32.totalorder %s17, 0
    %p59 = por %p57, %p58
    %p60 = scmp.ne.s32.totalorder %s48, %s49
    %p61 = scmp.eq.s32.totalorder %s18, 1
    %p62 = por %p60, %p61
    %p64 = scmp.ne.s32.totalorder %s49, %s63
    %p65 = scmp.eq.s32.totalorder %s18, 0
    %p66 = por %p64, %p65
    %s68 = sadd.s32 %s67, 1
    %p71 = scmp.eq.s32.totalorder %s12, 1
    %p72 = scmp.ne.s32.totalorder %s67, %s69
    %p73 = scmp.eq.s32.totalorder %s12, 0
    %p74 = por %p72, %p73
    %p75 = scmp.ne.s32.totalorder %s67, %s69
    %p76 = scmp.eq.s32.totalorder %s17, 1
    %p77 = por %p75, %p76
    %p78 = scmp.ne.s32.totalorder %s69, %s70
    %p79 = scmp.eq.s32.totalorder %s17, 0
    %p80 = por %p78, %p79
    %p81 = scmp.ne.s32.totalorder %s69, %s70
    %p82 = scmp.eq.s32.totalorder %s18, 1
    %p83 = por %p81, %p82
    %p85 = scmp.ne.s32.totalorder %s70, %s84
    %p86 = scmp.eq.s32.totalorder %s18, 0
    %p87 = por %p85, %p86
    %s89 = sadd.s32 %s88, 1
    %p92 = scmp.eq.s32.totalorder %s12, 1
    %p93 = scmp.ne.s32.totalorder %s88, %s90
    %p94 = scmp.eq.s32.totalorder %s12, 0
    %p95 = por %p93, %p94
    %p96 = scmp.ne.s32.totalorder %s88, %s90
    %p97 = scmp.eq.s32.totalorder %s17, 1
    %p98 = por %p96, %p97
    %p99 = scmp.ne.s32.totalorder %s90, %s91
    %p100 = scmp.eq.s32.totalorder %s17, 0
    %p101 = por %p99, %p100
    %p102 = scmp.ne.s32.totalorder %s90, %s91
    %p103 = scmp.eq.s32.totalorder %s18, 1
    %p104 = por %p102, %p103
    %p106 = scmp.ne.s32.totalorder %s91, %s105
    %p107 = scmp.eq.s32.totalorder %s18, 0
    %p108 = por %p106, %p107
    %s109 = ssub.s32 %s12, %s19
    %p110 = scmp.eq.s32.totalorder %s109, 0
    %s112 = sadd.s32 %s111, 1
    %s113 = scalar_select %p110, %s111, %s112
    %p116 = pneg %p110
    %p117 = scmp.eq.s32.totalorder %s12, 1
    %p118 = por %p116, %p117
    %p119 = scmp.ne.s32.totalorder %s111, %s114
    %p120 = scmp.eq.s32.totalorder %s12, 0
    %p121 = por %p119, %p120
    %p122 = scmp.ne.s32.totalorder %s111, %s114
    %p123 = scmp.eq.s32.totalorder %s17, 1
    %p124 = por %p122, %p123
    %p125 = scmp.ne.s32.totalorder %s114, %s115
    %p126 = scmp.eq.s32.totalorder %s17, 0
    %p127 = por %p125, %p126
    %p128 = scmp.ne.s32.totalorder %s114, %s115
    %p129 = scmp.eq.s32.totalorder %s18, 1
    %p130 = por %p128, %p129
    %p132 = scmp.ne.s32.totalorder %s115, %s131
    %p133 = scmp.eq.s32.totalorder %s18, 0
    %p134 = por %p132, %p133
    %s135 = ssub.s32 %s12, %s19
    %p136 = scmp.eq.s32.totalorder %s135, 0
    %s138 = sadd.s32 %s137, 1
    %s139 = scalar_select %p136, %s137, %s138
    %p142 = pneg %p136
    %p143 = scmp.eq.s32.totalorder %s12, 1
    %p144 = por %p142, %p143
    %p145 = scmp.ne.s32.totalorder %s137, %s140
    %p146 = scmp.eq.s32.totalorder %s12, 0
    %p147 = por %p145, %p146
    %p148 = scmp.ne.s32.totalorder %s137, %s140
    %p149 = scmp.eq.s32.totalorder %s17, 1
    %p150 = por %p148, %p149
    %p151 = scmp.ne.s32.totalorder %s140, %s141
    %p152 = scmp.eq.s32.totalorder %s17, 0
    %p153 = por %p151, %p152
    %p154 = scmp.ne.s32.totalorder %s140, %s141
    %p155 = scmp.eq.s32.totalorder %s18, 1
    %p156 = por %p154, %p155
    %p158 = scmp.ne.s32.totalorder %s141, %s157
    %p159 = scmp.eq.s32.totalorder %s18, 0
    %p160 = por %p158, %p159
    %p161 = scmp.le.s32.totalorder 1, %s12
    %p162 = scmp.lt.s32.totalorder %s12, 3
    %p163 = pnand %p161, %p162
    %p164 = pneg %p163
    // Predicated region
    $region9: #{bottleneck_forward.4} parent=5 // pred_check
      _
    $region10: #{bottleneck_forward.4} parent=5 // pred_check_branch
      %166 = sbr.rel (%p163) target = $region12
    $region11: #{bottleneck_forward.4} parent=5 // pred_region
      %s167 = ssub.s32 %s12, 1
      // Predicated region
      $region13: #{bottleneck_forward.4} parent=11 // pred_check
        %p168 = pneg %p59
      $region14: #{bottleneck_forward.4} parent=11 // pred_check_branch
        %170 = sbr.rel (%p168) target = $region16
      $region15: #{bottleneck_forward.4} parent=11 // pred_region
        _
      $region16: #{bottleneck_forward.4} parent=11 // pred_fallthru
        _
      // Predicated region
      $region17: #{bottleneck_forward.4} parent=11 // pred_check
        %p171 = pneg %p80
      $region18: #{bottleneck_forward.4} parent=11 // pred_check_branch
        %173 = sbr.rel (%p171) target = $region20
      $region19: #{bottleneck_forward.4} parent=11 // pred_region
        _
      $region20: #{bottleneck_forward.4} parent=11 // pred_fallthru
        _
      // Predicated region
      $region21: #{bottleneck_forward.4} parent=11 // pred_check
        %p174 = pneg %p101
      $region22: #{bottleneck_forward.4} parent=11 // pred_check_branch
        %176 = sbr.rel (%p174) target = $region24
      $region23: #{bottleneck_forward.4} parent=11 // pred_region
        _
      $region24: #{bottleneck_forward.4} parent=11 // pred_fallthru
        _
    $region12: #{bottleneck_forward.4} parent=5 // pred_fallthru
      _
    %p177 = scmp.lt.s32.totalorder %s12, 2
    // Predicated region
    $region25: #{bottleneck_forward.4} parent=5 // pred_check
      %p178 = pneg %p177
    $region26: #{bottleneck_forward.4} parent=5 // pred_check_branch
      %180 = sbr.rel (%p178) target = $region28
    $region27: #{bottleneck_forward.4} parent=5 // pred_region
      // Predicated region
      $region29: #{bottleneck_forward.4} parent=27 // pred_check
        %p181 = pneg %p32
      $region30: #{bottleneck_forward.4} parent=27 // pred_check_branch
        %183 = sbr.rel (%p181) target = $region32
      $region31: #{bottleneck_forward.4} parent=27 // pred_region
        %s184 = smul.u32 2, %s12
        %p185 = scmp.lt.s32.totalorder %s184, 3
        %s186 = scalar_select %p185, %s184, 3
        %s187 = smul.addr %s186, 4
        %s188 = scalar_lea.vmem %s0, %s187
        %s189 = smul.u32 2, %s12
      $region32: #{bottleneck_forward.4} parent=27 // pred_fallthru
        _
    $region28: #{bottleneck_forward.4} parent=5 // pred_fallthru
      _
    %p190 = scmp.le.s32.totalorder 1, %s12
    %p191 = scmp.lt.s32.totalorder %s12, 3
    %p192 = pnand %p190, %p191
    %p193 = pneg %p192
    // Predicated region
    $region33: #{bottleneck_forward.4} parent=5 // pred_check
      _
    $region34: #{bottleneck_forward.4} parent=5 // pred_check_branch
      %195 = sbr.rel (%p192) target = $region36
    $region35: #{bottleneck_forward.4} parent=5 // pred_region
      %s196 = ssub.s32 %s12, 1
      %s197 = smul.u32 2, %s17
      %p198 = scmp.lt.s32.totalorder %s197, 3
      %s199 = scalar_select %p198, %s197, 3
      %s200 = smul.addr %s199, 4
      %s201 = scalar_lea.vmem %s0, %s200
      %p202 = pneg %p38
      %p203 = pneg %p35
      %p204 = pneg %p59
      %p205 = pneg %p56
      %p206 = pneg %p80
      %p207 = pneg %p77
      %p208 = pneg %p101
      %p209 = pneg %p98
      %p210 = pneg %p127
      %p211 = pneg %p124
      %s212 = smul.u32 2, %s17
      %p213 = scmp.lt.s32.totalorder %s212, 3
      %s214 = scalar_select %p213, %s212, 3
      %s215 = smul.addr %s214, 8
      %s216 = scalar_lea.vmem %s4, %s215
      %p217 = pneg %p153
      %p218 = pneg %p150
      %p219 = scmp.lt.s32.totalorder %s17, 1
      %s220 = scalar_select %p219, %s17, 1
      %s221 = smul.addr %s220, 8
      %s222 = scalar_lea.vmem %s5, %s221
      %s223 = smul.u32 2, %s17
      %p224 = scmp.lt.s32.totalorder %s223, 3
      %s225 = scalar_select %p224, %s223, 3
      %s226 = smul.addr %s225, 4
      %s227 = scalar_lea.vmem %s0, %s226
      %s228 = smul.u32 2, %s17
      %s229 = smul.u32 2, %s17
      %p230 = scmp.lt.s32.totalorder %s229, 3
      %s231 = scalar_select %p230, %s229, 3
      %s232 = smul.addr %s231, 8
      %s233 = scalar_lea.vmem %s4, %s232
      %s234 = smul.u32 2, %s17
      %p235 = scmp.lt.s32.totalorder %s17, 1
      %s236 = scalar_select %p235, %s17, 1
      %s237 = smul.addr %s236, 8
      %s238 = scalar_lea.vmem %s5, %s237
      %v240 = vld [vmem:[%s227] sm:$0xf]
      %v241 = vld [vmem:[%s227 + $0x4] sm:$0xf]
      %v242 = vld [vmem:[%s1] sm:$0xf]
      %v243 = vld [vmem:[%s1 + $0x4] sm:$0xf]
      %v244 = vld [vmem:[%s1 + $0x8] sm:$0xf]
      %v245 = vld [vmem:[%s1 + $0xc] sm:$0xf]
      %v246 = vld [vmem:[%s1 + $0x10] sm:$0xf]
      %v247 = vld [vmem:[%s1 + $0x14] sm:$0xf]
      %v248 = vld [vmem:[%s1 + $0x18] sm:$0xf]
      %v249 = vld [vmem:[%s1 + $0x1c] sm:$0xf]
      %v250 = vld [vmem:[%s2] sm:$0x1]
      %v252 = vperm.slane %v250, 0
      %v256 = vunpack.c.l.b16 %v240
      %v257 = vunpack.c.l.b16 %v241
      %v258 = vpack.c.b16 %v257, %v256
      %v267 = vunpack.c.l.b16 %v242
      %v268 = vunpack.c.l.b16 %v243
      %v269 = vunpack.c.l.b16 %v244
      %v270 = vunpack.c.l.b16 %v245
      %v271 = vunpack.c.l.b16 %v246
      %v272 = vunpack.c.l.b16 %v247
      %v273 = vunpack.c.l.b16 %v248
      %v274 = vunpack.c.l.b16 %v249
      %v275 = vpack.c.b16 %v268, %v267
      %v276 = vpack.c.b16 %v270, %v269
      %v277 = vpack.c.b16 %v272, %v271
      %v278 = vpack.c.b16 %v274, %v273
      %vm283 = vcmask 523264
      %v285 = vsel %vm283, %v258, 0
      %287 = vmatpush.bf16.msra.mxu0 0
      %288 = vmatpush.bf16.msra.mxu0 0
      %289 = vmatpush.bf16.msra.mxu0 0
      %290 = vmatpush.bf16.msra.mxu0 0
      %291 = vmatpush.bf16.msra.mxu0 %v278
      %292 = vmatpush.bf16.msra.mxu0 %v277
      %293 = vmatpush.bf16.msra.mxu0 %v276
      %294 = vmatpush.bf16.msra.mxu0 %v275
      %295 = vmatmul.bf16.gmra.mxu0 %v285
      %v296 = vpop.f32.mrf.mxu0
      %v297 = vadd.f32 %v252, %v296
      %v298 = vpop.f32.mrf.mxu0
      %v299 = vadd.f32 %v252, %v298
      %300 = vdwg.mxu0
      %v301 = vmax.f32 %v297, 0.0
      %v302 = vmax.f32 %v299, 0.0
      %vm305 = vcmask 1040384
      %v306 = vrot.slane %v301, 7
      %v307 = vrot.slane %v302, 7
      %v308 = vsel %vm305, %v306, %v307
      %v312 = vsel %vm305, 0.0, %v306
      %v313 = vsel %vm305, %v307, 0.0
      %vm316 = vcmask 1046528
      %v317 = vrot.slane %v312, 1
      %v318 = vrot.slane %v308, 1
      %v319 = vsel %vm316, %v317, %v318
      %v320 = vrot.slane %v313, 1
      %v321 = vsel %vm316, %v318, %v320
      %322 = vrot.lane.b32.xlu0 %v319, 32
      %v323 = vpop.permute.xlu0 %322
      %324 = vrot.lane.b32.xlu0 %v321, 32
      %v325 = vpop.permute.xlu0 %324
      %vm328 = vcmask 1045504
      %v329 = vrot.slane %v312, 2
      %v330 = vrot.slane %v308, 2
      %v331 = vsel %vm328, %v329, %v330
      %v332 = vrot.slane %v313, 2
      %v333 = vsel %vm328, %v330, %v332
      %334 = vrot.lane.b32.xlu0 %v331, 64
      %v335 = vpop.permute.xlu0 %334
      %336 = vrot.lane.b32.xlu0 %v333, 64
      %v337 = vpop.permute.xlu0 %336
      %vm340 = vcmask 261120
      %v341 = vsel %vm340, %v312, %v323
      %v342 = vsel %vm340, %v308, %v325
      %v343 = vsel %vm283, %v341, %v335
      %v344 = vsel %vm283, %v342, %v337
      %v345 = vpack.c.bf16 %v344, %v343
      %v346 = vld [vmem:[%s3] sm:$0xf]
      %v347 = vld [vmem:[%s3 + $0x4] sm:$0xf]
      %v348 = vld [vmem:[%s3 + $0x8] sm:$0xf]
      %v349 = vld [vmem:[%s3 + $0xc] sm:$0xf]
      %v350 = vld [vmem:[%s3 + $0x10] sm:$0xf]
      %v351 = vld [vmem:[%s3 + $0x14] sm:$0xf]
      %v352 = vld [vmem:[%s3 + $0x18] sm:$0xf]
      %v353 = vld [vmem:[%s3 + $0x1c] sm:$0xf]
      %v354 = vld [vmem:[%s3 + $0x20] sm:$0xf]
      %v355 = vld [vmem:[%s3 + $0x24] sm:$0xf]
      %v356 = vld [vmem:[%s3 + $0x28] sm:$0xf]
      %v357 = vld [vmem:[%s3 + $0x2c] sm:$0xf]
      %v370 = vunpack.c.l.b16 %v346
      %v371 = vunpack.c.l.b16 %v347
      %v372 = vunpack.c.l.b16 %v348
      %v373 = vunpack.c.l.b16 %v349
      %v374 = vunpack.c.l.b16 %v350
      %v375 = vunpack.c.l.b16 %v351
      %v376 = vunpack.c.l.b16 %v352
      %v377 = vunpack.c.l.b16 %v353
      %v378 = vunpack.c.l.b16 %v354
      %v379 = vunpack.c.l.b16 %v355
      %v380 = vunpack.c.l.b16 %v356
      %v381 = vunpack.c.l.b16 %v357
      %v382 = vpack.c.b16 %v371, %v370
      %v383 = vpack.c.b16 %v373, %v372
      %v384 = vpack.c.b16 %v375, %v374
      %v385 = vpack.c.b16 %v377, %v376
      %v386 = vpack.c.b16 %v379, %v378
      %v387 = vpack.c.b16 %v381, %v380
      %vm394 = vcmask 785408
      %v396 = vsel %vm394, %v345, 0
      %398 = vmatpush.bf16.msra.mxu0 0
      %399 = vmatpush.bf16.msra.mxu0 0
      %400 = vmatpush.bf16.msra.mxu0 %v387
      %401 = vmatpush.bf16.msra.mxu0 %v386
      %402 = vmatpush.bf16.msra.mxu0 %v385
      %403 = vmatpush.bf16.msra.mxu0 %v384
      %404 = vmatpush.bf16.msra.mxu0 %v383
      %405 = vmatpush.bf16.msra.mxu0 %v382
      %406 = vmatmul.bf16.gmra.mxu0 %v396
      %v407 = vpop.f32.mrf.mxu0
      %v408 = vadd.f32 0.0, %v407
      %v409 = vpop.f32.mrf.mxu0
      %v410 = vadd.f32 0.0, %v409
      %411 = vdwg.mxu0
      %412 = vst.msk [vmem:[%s233] sm:$0xff] %vm283, %v408
      %413 = vst.msk [vmem:[%s233 + $0x8] sm:$0xff] %vm283, %v410
      %v414 = vsel %vm283, %v408, 0.0
      %v415 = vsel %vm283, %v410, 0.0
      %v416 = vadd.f32 %v414, %v415
      %v417 = vmul.f32 %v408, %v408
      %v418 = vmul.f32 %v410, %v410
      %v419 = vsel %vm283, %v417, 0.0
      %v420 = vsel %vm283, %v418, 0.0
      %v421 = vadd.f32 %v419, %v420
      %423 = vrot.lane.b32.xlu0 %v421, 64
      %v424 = vpop.permute.xlu0 %423
      %v426 = vsel %vm283, %v416, %v424
      %427 = vst [vmem:[%s238] sm:$0xff] %v426
      %s428 = smul.u32 2, %s17
      %p429 = scmp.lt.s32.totalorder %s428, 3
      %s430 = scalar_select %p429, %s428, 3
      %s431 = smul.addr %s430, 8
      %s432 = scalar_lea.vmem %s4, %s431
      %p433 = scmp.lt.s32.totalorder %s17, 1
      %s434 = scalar_select %p433, %s17, 1
      %s435 = smul.addr %s434, 8
      %s436 = scalar_lea.vmem %s5, %s435
      // Predicated region
      $region37: #{bottleneck_forward.4} parent=35 // pred_check
        %p437 = pneg %p124
      $region38: #{bottleneck_forward.4} parent=35 // pred_check_branch
        %439 = sbr.rel (%p437) target = $region40
      $region39: #{bottleneck_forward.4} parent=35 // pred_region
        %s440 = smul.u32 2, %s17
      $region40: #{bottleneck_forward.4} parent=35 // pred_fallthru
        _
      // Predicated region
      $region41: #{bottleneck_forward.4} parent=35 // pred_check
        %p441 = pneg %p150
      $region42: #{bottleneck_forward.4} parent=35 // pred_check_branch
        %443 = sbr.rel (%p441) target = $region44
      $region43: #{bottleneck_forward.4} parent=35 // pred_region
        _
      $region44: #{bottleneck_forward.4} parent=35 // pred_fallthru
        _
    $region36: #{bottleneck_forward.4} parent=5 // pred_fallthru
      _
    %p444 = scmp.le.s32.totalorder 2, %s12
    // Predicated region
    $region45: #{bottleneck_forward.4} parent=5 // pred_check
      %p445 = pneg %p444
    $region46: #{bottleneck_forward.4} parent=5 // pred_check_branch
      %447 = sbr.rel (%p445) target = $region48
    $region47: #{bottleneck_forward.4} parent=5 // pred_region
      %s448 = ssub.s32 %s12, 2
      // Predicated region
      $region49: #{bottleneck_forward.4} parent=47 // pred_check
        %p449 = pneg %p130
      $region50: #{bottleneck_forward.4} parent=47 // pred_check_branch
        %451 = sbr.rel (%p449) target = $region52
      $region51: #{bottleneck_forward.4} parent=47 // pred_region
        %s452 = smul.u32 2, %s18
        %p453 = scmp.lt.s32.totalorder %s452, 3
        %s454 = scalar_select %p453, %s452, 3
        %s455 = smul.addr %s454, 8
        %s456 = scalar_lea.vmem %s4, %s455
      $region52: #{bottleneck_forward.4} parent=47 // pred_fallthru
        _
      // Predicated region
      $region53: #{bottleneck_forward.4} parent=47 // pred_check
        %p457 = pneg %p156
      $region54: #{bottleneck_forward.4} parent=47 // pred_check_branch
        %459 = sbr.rel (%p457) target = $region56
      $region55: #{bottleneck_forward.4} parent=47 // pred_region
        %p460 = scmp.lt.s32.totalorder %s18, 1
        %s461 = scalar_select %p460, %s18, 1
        %s462 = smul.addr %s461, 8
        %s463 = scalar_lea.vmem %s5, %s462
      $region56: #{bottleneck_forward.4} parent=47 // pred_fallthru
        _
    $region48: #{bottleneck_forward.4} parent=5 // pred_fallthru
      _
  $region6: #{bottleneck_forward.4} parent=0 // loop_footer
    %s16 = sadd.s32 1, %s12
  $region7: #{bottleneck_forward.4} parent=0 // loop_footer_branch
    %11 = sbr.rel target = $region3
  $region8: #{bottleneck_forward.4} parent=0 // loop_exit
    _

// kernel: tile.23
$region0: #{tile.23}
  #allocation0 [shape = 's32[1]{0}', space=sflag, size = 0x4, scoped, tag = 'scoped memory for tile.23']
  %s0 = inlined_call_operand.vmem [shape: f32[4], index: 0, kind: input, shape index: {}]
  %s1 = inlined_call_operand.vmem [shape: f32[128,4], index: 1, kind: output, shape index: {}]
  // Predicated region
  $region2: #{tile.23} parent=0 // pred_check
    _
  $region3: #{tile.23} parent=0 // pred_check_branch
    %3 = sbr.rel (0) target = $region5
  $region4: #{tile.23} parent=0 // pred_region
    _
  $region5: #{tile.23} parent=0 // pred_fallthru
    _
  %v4 = vld [vmem:[%s0] ss:$0 sm:$0xff]
  %5 = vst [vmem:[%s1] sm:$0xff] %v4
  %s6 = scalar_lea.vmem %s1, 8
  %7 = vst [vmem:[%s6] sm:$0xff] %v4
  %s8 = scalar_lea.vmem %s1, 16
  %9 = vst [vmem:[%s8] sm:$0xff] %v4
  %s10 = scalar_lea.vmem %s1, 24
  %11 = vst [vmem:[%s10] sm:$0xff] %v4
  %s12 = scalar_lea.vmem %s1, 32
  %13 = vst [vmem:[%s12] sm:$0xff] %v4
  %s14 = scalar_lea.vmem %s1, 40
  %15 = vst [vmem:[%s14] sm:$0xff] %v4
  %s16 = scalar_lea.vmem %s1, 48
  %17 = vst [vmem:[%s16] sm:$0xff] %v4
  %s18 = scalar_lea.vmem %s1, 56
  %19 = vst [vmem:[%s18] sm:$0xff] %v4
  %s20 = scalar_lea.vmem %s1, 64
  %21 = vst [vmem:[%s20] sm:$0xff] %v4
  %s22 = scalar_lea.vmem %s1, 72
  %23 = vst [vmem:[%s22] sm:$0xff] %v4
  %s24 = scalar_lea.vmem %s1, 80
  %25 = vst [vmem:[%s24] sm:$0xff] %v4
  %s26 = scalar_lea.vmem %s1, 88
  %27 = vst [vmem:[%s26] sm:$0xff] %v4
  %s28 = scalar_lea.vmem %s1, 96
  %29 = vst [vmem:[%s28] sm:$0xff] %v4
  %s30 = scalar_lea.vmem %s1, 104
  %31 = vst [vmem:[%s30] sm:$0xff] %v4
  %s32 = scalar_lea.vmem %s1, 112
  %33 = vst [vmem:[%s32] sm:$0xff] %v4
  %s34 = scalar_lea.vmem %s1, 120
  %35 = vst [vmem:[%s34] sm:$0xff] %v4

// kernel: tile.24
$region0: #{tile.24}
  %s0 = inlined_call_operand.vmem [shape: f32[128,4], index: 0, kind: input, shape index: {}]
  %s1 = inlined_call_operand.vmem [shape: f32[1,512], index: 1, kind: output, shape index: {}]
  $region1: #{tile.24} parent=0
    #allocation0 [shape = 'u8[16384]{0}', space=vmem, size = 0x4000, scoped, tag = 'scoped mem for output reshape']
    %v2 = vld [vmem:[%s0] sm:$0x1]
    %s3 = scalar_lea.vmem %s0, 31
    %v4 = vld [vmem:[%s3] sm:$0x2]
    %vm5 = vcmask 1041409
    %v6 = vsel %vm5, %v4, %v2
    %s7 = scalar_lea.vmem %s0, 62
    %v8 = vld [vmem:[%s7] sm:$0x4]
    %vm9 = vcmask 1042434
    %v10 = vsel %vm9, %v8, %v6
    %s11 = scalar_lea.vmem %s0, 93
    %v12 = vld [vmem:[%s11] sm:$0x8]
    %vm13 = vcmask 1043459
    %v14 = vsel %vm13, %v12, %v10
    %vm15 = vcmask 31744
    %16 = vst.msk [vmem:[#allocation0] ss:$8 sm:$0xf] %vm15, %v14
    %s17 = scalar_lea.vmem %s0, 31
    %v18 = vld [vmem:[%s17] sm:$0x1]
    %s19 = scalar_lea.vmem %s0, 62
    %v20 = vld [vmem:[%s19] sm:$0x2]
    %vm21 = vcmask 1041409
    %v22 = vsel %vm21, %v20, %v18
    %s23 = scalar_lea.vmem %s0, 93
    %v24 = vld [vmem:[%s23] sm:$0x4]
    %vm25 = vcmask 1042434
    %v26 = vsel %vm25, %v24, %v22
    %s27 = scalar_lea.vmem %s0, 124
    %v28 = vld [vmem:[%s27] sm:$0x8]
    %vm29 = vcmask 1043459
    %v30 = vsel %vm29, %v28, %v26
    %31 = vrot.lane.b32.xlu0 %v30, 124
    %v32 = vpop.permute.xlu0 %31
    %vm33 = vcmask 1048544
    %34 = vst.msk [vmem:[#allocation0] ss:$8 sm:$0xf] %vm33, %v32
    %s35 = scalar_lea.vmem %s0, 30
    %v36 = vld [vmem:[%s35] sm:$0x1]
    %s37 = scalar_lea.vmem %s0, 61
    %v38 = vld [vmem:[%s37] sm:$0x2]
    %vm39 = vcmask 1041409
    %v40 = vsel %vm39, %v38, %v36
    %s41 = scalar_lea.vmem %s0, 92
    %v42 = vld [vmem:[%s41] sm:$0x4]
    %vm43 = vcmask 1042434
    %v44 = vsel %vm43, %v42, %v40
    %s45 = scalar_lea.vmem %s0, 123
    %v46 = vld [vmem:[%s45] sm:$0x8]
    %vm47 = vcmask 1043459
    %v48 = vsel %vm47, %v46, %v44
    %49 = vrot.lane.b32.xlu0 %v48, 120
    %v50 = vpop.permute.xlu0 %49
    %vm51 = vcmask 1015744
    %52 = vst.msk [vmem:[#allocation0] ss:$8 sm:$0xf] %vm51, %v50
    %s53 = scalar_lea.vmem %s0, 29
    %v54 = vld [vmem:[%s53] sm:$0x1]
    %s55 = scalar_lea.vmem %s0, 60
    %v56 = vld [vmem:[%s55] sm:$0x2]
    %vm57 = vcmask 1041409
    %v58 = vsel %vm57, %v56, %v54
    %s59 = scalar_lea.vmem %s0, 91
    %v60 = vld [vmem:[%s59] sm:$0x4]
    %vm61 = vcmask 1042434
    %v62 = vsel %vm61, %v60, %v58
    %s63 = scalar_lea.vmem %s0, 122
    %v64 = vld [vmem:[%s63] sm:$0x8]
    %vm65 = vcmask 1043459
    %v66 = vsel %vm65, %v64, %v62
    %67 = vrot.lane.b32.xlu0 %v66, 116
    %v68 = vpop.permute.xlu0 %67
    %vm69 = vcmask 982944
    %70 = vst.msk [vmem:[#allocation0] ss:$8 sm:$0xf] %vm69, %v68
    %s71 = scalar_lea.vmem %s0, 28
    %v72 = vld [vmem:[%s71] sm:$0x1]
    %s73 = scalar_lea.vmem %s0, 59
    %v74 = vld [vmem:[%s73] sm:$0x2]
    %vm75 = vcmask 1041409
    %v76 = vsel %vm75, %v74, %v72
    %s77 = scalar_lea.vmem %s0, 90
    %v78 = vld [vmem:[%s77] sm:$0x4]
    %vm79 = vcmask 1042434
    %v80 = vsel %vm79, %v78, %v76
    %s81 = scalar_lea.vmem %s0, 121
    %v82 = vld [vmem:[%s81] sm:$0x8]
    %vm83 = vcmask 1043459
    %v84 = vsel %vm83, %v82, %v80
    %85 = vrot.lane.b32.xlu0 %v84, 112
    %v86 = vpop.permute.xlu0 %85
    %vm87 = vcmask 950144
    %88 = vst.msk [vmem:[#allocation0] ss:$8 sm:$0xf] %vm87, %v86
    %s89 = scalar_lea.vmem %s0, 27
    %v90 = vld [vmem:[%s89] sm:$0x1]
    %s91 = scalar_lea.vmem %s0, 58
    %v92 = vld [vmem:[%s91] sm:$0x2]
    %vm93 = vcmask 1041409
    %v94 = vsel %vm93, %v92, %v90
    %s95 = scalar_lea.vmem %s0, 89
    %v96 = vld [vmem:[%s95] sm:$0x4]
    %vm97 = vcmask 1042434
    %v98 = vsel %vm97, %v96, %v94
    %s99 = scalar_lea.vmem %s0, 120
    %v100 = vld [vmem:[%s99] sm:$0x8]
    %vm101 = vcmask 1043459
    %v102 = vsel %vm101, %v100, %v98
    %103 = vrot.lane.b32.xlu0 %v102, 108
    %v104 = vpop.permute.xlu0 %103
    %vm105 = vcmask 917344
    %106 = vst.msk [vmem:[#allocation0] ss:$8 sm:$0xf] %vm105, %v104
    %s107 = scalar_lea.vmem %s0, 26
    %v108 = vld [vmem:[%s107] sm:$0x1]
    %s109 = scalar_lea.vmem %s0, 57
    %v110 = vld [vmem:[%s109] sm:$0x2]
    %vm111 = vcmask 1041409
    %v112 = vsel %vm111, %v110, %v108
    %s113 = scalar_lea.vmem %s0, 88
    %v114 = vld [vmem:[%s113] sm:$0x4]
    %vm115 = vcmask 1042434
    %v116 = vsel %vm115, %v114, %v112
    %s117 = scalar_lea.vmem %s0, 119
    %v118 = vld [vmem:[%s117] sm:$0x8]
    %vm119 = vcmask 1043459
    %v120 = vsel %vm119, %v118, %v116
    %121 = vrot.lane.b32.xlu0 %v120, 104
    %v122 = vpop.permute.xlu0 %121
    %vm123 = vcmask 884544
    %124 = vst.msk [vmem:[#allocation0] ss:$8 sm:$0xf] %vm123, %v122
    %s125 = scalar_lea.vmem %s0, 25
    %v126 = vld [vmem:[%s125] sm:$0x1]
    %s127 = scalar_lea.vmem %s0, 56
    %v128 = vld [vmem:[%s127] sm:$0x2]
    %vm129 = vcmask 1041409
    %v130 = vsel %vm129, %v128, %v126
    %s131 = scalar_lea.vmem %s0, 87
    %v132 = vld [vmem:[%s131] sm:$0x4]
    %vm133 = vcmask 1042434
    %v134 = vsel %vm133, %v132, %v130
    %s135 = scalar_lea.vmem %s0, 118
    %v136 = vld [vmem:[%s135] sm:$0x8]
    %vm137 = vcmask 1043459
    %v138 = vsel %vm137, %v136, %v134
    %139 = vrot.lane.b32.xlu0 %v138, 100
    %v140 = vpop.permute.xlu0 %139
    %vm141 = vcmask 851744
    %142 = vst.msk [vmem:[#allocation0] ss:$8 sm:$0xf] %vm141, %v140
    %s143 = scalar_lea.vmem %s0, 24
    %v144 = vld [vmem:[%s143] sm:$0x1]
    %s145 = scalar_lea.vmem %s0, 55
    %v146 = vld [vmem:[%s145] sm:$0x2]
    %vm147 = vcmask 1041409
    %v148 = vsel %vm147, %v146, %v144
    %s149 = scalar_lea.vmem %s0, 86
    %v150 = vld [vmem:[%s149] sm:$0x4]
    %vm151 = vcmask 1042434
    %v152 = vsel %vm151, %v150, %v148
    %s153 = scalar_lea.vmem %s0, 117
    %v154 = vld [vmem:[%s153] sm:$0x8]
    %vm155 = vcmask 1043459
    %v156 = vsel %vm155, %v154, %v152
    %157 = vrot.lane.b32.xlu0 %v156, 96
    %v158 = vpop.permute.xlu0 %157
    %vm159 = vcmask 818944
    %160 = vst.msk [vmem:[#allocation0] ss:$8 sm:$0xf] %vm159, %v158
    %s161 = scalar_lea.vmem %s0, 23
    %v162 = vld [vmem:[%s161] sm:$0x1]
    %s163 = scalar_lea.vmem %s0, 54
    %v164 = vld [vmem:[%s163] sm:$0x2]
    %vm165 = vcmask 1041409
    %v166 = vsel %vm165, %v164, %v162
    %s167 = scalar_lea.vmem %s0, 85
    %v168 = vld [vmem:[%s167] sm:$0x4]
    %vm169 = vcmask 1042434
    %v170 = vsel %vm169, %v168, %v166
    %s171 = scalar_lea.vmem %s0, 116
    %v172 = vld [vmem:[%s171] sm:$0x8]
    %vm173 = vcmask 1043459
    %v174 = vsel %vm173, %v172, %v170
    %175 = vrot.lane.b32.xlu0 %v174, 92
    %v176 = vpop.permute.xlu0 %175
    %vm177 = vcmask 786144
    %178 = vst.msk [vmem:[#allocation0] ss:$8 sm:$0xf] %vm177, %v176
    %s179 = scalar_lea.vmem %s0, 22
    %v180 = vld [vmem:[%s179] sm:$0x1]
    %s181 = scalar_lea.vmem %s0, 53
    %v182 = vld [vmem:[%s181] sm:$0x2]
    %vm183 = vcmask 1041409
    %v184 = vsel %vm183, %v182, %v180
    %s185 = scalar_lea.vmem %s0, 84
    %v186 = vld [vmem:[%s185] sm:$0x4]
    %vm187 = vcmask 1042434
    %v188 = vsel %vm187, %v186, %v184
    %s189 = scalar_lea.vmem %s0, 115
    %v190 = vld [vmem:[%s189] sm:$0x8]
    %vm191 = vcmask 1043459
    %v192 = vsel %vm191, %v190, %v188
    %193 = vrot.lane.b32.xlu0 %v192, 88
    %v194 = vpop.permute.xlu0 %193
    %vm195 = vcmask 753344
    %196 = vst.msk [vmem:[#allocation0] ss:$8 sm:$0xf] %vm195, %v194
    %s197 = scalar_lea.vmem %s0, 21
    %v198 = vld [vmem:[%s197] sm:$0x1]
    %s199 = scalar_lea.vmem %s0, 52
    %v200 = vld [vmem:[%s199] sm:$0x2]
    %vm201 = vcmask 1041409
    %v202 = vsel %vm201, %v200, %v198
    %s203 = scalar_lea.vmem %s0, 83
    %v204 = vld [vmem:[%s203] sm:$0x4]
    %vm205 = vcmask 1042434
    %v206 = vsel %vm205, %v204, %v202
    %s207 = scalar_lea.vmem %s0, 114
    %v208 = vld [vmem:[%s207] sm:$0x8]
    %vm209 = vcmask 1043459
    %v210 = vsel %vm209, %v208, %v206
    %211 = vrot.lane.b32.xlu0 %v210, 84
    %v212 = vpop.permute.xlu0 %211
    %vm213 = vcmask 720544
    %214 = vst.msk [vmem:[#allocation0] ss:$8 sm:$0xf] %vm213, %v212
    %s215 = scalar_lea.vmem %s0, 20
    %v216 = vld [vmem:[%s215] sm:$0x1]
    %s217 = scalar_lea.vmem %s0, 51
    %v218 = vld [vmem:[%s217] sm:$0x2]
    %vm219 = vcmask 1041409
    %v220 = vsel %vm219, %v218, %v216
    %s221 = scalar_lea.vmem %s0, 82
    %v222 = vld [vmem:[%s221] sm:$0x4]
    %vm223 = vcmask 1042434
    %v224 = vsel %vm223, %v222, %v220
    %s225 = scalar_lea.vmem %s0, 113
    %v226 = vld [vmem:[%s225] sm:$0x8]
    %vm227 = vcmask 1043459
    %v228 = vsel %vm227, %v226, %v224
    %229 = vrot.lane.b32.xlu0 %v228, 80
    %v230 = vpop.permute.xlu0 %229
    %vm231 = vcmask 687744
    %232 = vst.msk [vmem:[#allocation0] ss:$8 sm:$0xf] %vm231, %v230
    %s233 = scalar_lea.vmem %s0, 19
    %v234 = vld [vmem:[%s233] sm:$0x1]
    %s235 = scalar_lea.vmem %s0, 50
    %v236 = vld [vmem:[%s235] sm:$0x2]
    %vm237 = vcmask 1041409
    %v238 = vsel %vm237, %v236, %v234
    %s239 = scalar_lea.vmem %s0, 81
    %v240 = vld [vmem:[%s239] sm:$0x4]
    %vm241 = vcmask 1042434
    %v242 = vsel %vm241, %v240, %v238
    %s243 = scalar_lea.vmem %s0, 112
    %v244 = vld [vmem:[%s243] sm:$0x8]
    %vm245 = vcmask 1043459
    %v246 = vsel %vm245, %v244, %v242
    %247 = vrot.lane.b32.xlu0 %v246, 76
    %v248 = vpop.permute.xlu0 %247
    %vm249 = vcmask 654944
    %250 = vst.msk [vmem:[#allocation0] ss:$8 sm:$0xf] %vm249, %v248
    %s251 = scalar_lea.vmem %s0, 18
    %v252 = vld [vmem:[%s251] sm:$0x1]
    %s253 = scalar_lea.vmem %s0, 49
    %v254 = vld [vmem:[%s253] sm:$0x2]
    %vm255 = vcmask 1041409
    %v256 = vsel %vm255, %v254, %v252
    %s257 = scalar_lea.vmem %s0, 80
    %v258 = vld [vmem:[%s257] sm:$0x4]
    %vm259 = vcmask 1042434
    %v260 = vsel %vm259, %v258, %v256
    %s261 = scalar_lea.vmem %s0, 111
    %v262 = vld [vmem:[%s261] sm:$0x8]
    %vm263 = vcmask 1043459
    %v264 = vsel %vm263, %v262, %v260
    %265 = vrot.lane.b32.xlu0 %v264, 72
    %v266 = vpop.permute.xlu0 %265
    %vm267 = vcmask 622144
    %268 = vst.msk [vmem:[#allocation0] ss:$8 sm:$0xf] %vm267, %v266
    %s269 = scalar_lea.vmem %s0, 17
    %v270 = vld [vmem:[%s269] sm:$0x1]
    %s271 = scalar_lea.vmem %s0, 48
    %v272 = vld [vmem:[%s271] sm:$0x2]
    %vm273 = vcmask 1041409
    %v274 = vsel %vm273, %v272, %v270
    %s275 = scalar_lea.vmem %s0, 79
    %v276 = vld [vmem:[%s275] sm:$0x4]
    %vm277 = vcmask 1042434
    %v278 = vsel %vm277, %v276, %v274
    %s279 = scalar_lea.vmem %s0, 110
    %v280 = vld [vmem:[%s279] sm:$0x8]
    %vm281 = vcmask 1043459
    %v282 = vsel %vm281, %v280, %v278
    %283 = vrot.lane.b32.xlu0 %v282, 68
    %v284 = vpop.permute.xlu0 %283
    %vm285 = vcmask 589344
    %286 = vst.msk [vmem:[#allocation0] ss:$8 sm:$0xf] %vm285, %v284
    %s287 = scalar_lea.vmem %s0, 16
    %v288 = vld [vmem:[%s287] sm:$0x1]
    %s289 = scalar_lea.vmem %s0, 47
    %v290 = vld [vmem:[%s289] sm:$0x2]
    %vm291 = vcmask 1041409
    %v292 = vsel %vm291, %v290, %v288
    %s293 = scalar_lea.vmem %s0, 78
    %v294 = vld [vmem:[%s293] sm:$0x4]
    %vm295 = vcmask 1042434
    %v296 = vsel %vm295, %v294, %v292
    %s297 = scalar_lea.vmem %s0, 109
    %v298 = vld [vmem:[%s297] sm:$0x8]
    %vm299 = vcmask 1043459
    %v300 = vsel %vm299, %v298, %v296
    %301 = vrot.lane.b32.xlu0 %v300, 64
    %v302 = vpop.permute.xlu0 %301
    %vm303 = vcmask 556544
    %304 = vst.msk [vmem:[#allocation0] ss:$8 sm:$0xf] %vm303, %v302
    %s305 = scalar_lea.vmem %s0, 15
    %v306 = vld [vmem:[%s305] sm:$0x1]
    %s307 = scalar_lea.vmem %s0, 46
    %v308 = vld [vmem:[%s307] sm:$0x2]
    %vm309 = vcmask 1041409
    %v310 = vsel %vm309, %v308, %v306
    %s311 = scalar_lea.vmem %s0, 77
    %v312 = vld [vmem:[%s311] sm:$0x4]
    %vm313 = vcmask 1042434
    %v314 = vsel %vm313, %v312, %v310
    %s315 = scalar_lea.vmem %s0, 108
    %v316 = vld [vmem:[%s315] sm:$0x8]
    %vm317 = vcmask 1043459
    %v318 = vsel %vm317, %v316, %v314
    %319 = vrot.lane.b32.xlu0 %v318, 60
    %v320 = vpop.permute.xlu0 %319
    %vm321 = vcmask 523744
    %322 = vst.msk [vmem:[#allocation0] ss:$8 sm:$0xf] %vm321, %v320
    %s323 = scalar_lea.vmem %s0, 14
    %v324 = vld [vmem:[%s323] sm:$0x1]
    %s325 = scalar_lea.vmem %s0, 45
    %v326 = vld [vmem:[%s325] sm:$0x2]
    %vm327 = vcmask 1041409
    %v328 = vsel %vm327, %v326, %v324
    %s329 = scalar_lea.vmem %s0, 76
    %v330 = vld [vmem:[%s329] sm:$0x4]
    %vm331 = vcmask 1042434
    %v332 = vsel %vm331, %v330, %v328
    %s333 = scalar_lea.vmem %s0, 107
    %v334 = vld [vmem:[%s333] sm:$0x8]
    %vm335 = vcmask 1043459
    %v336 = vsel %vm335, %v334, %v332
    %337 = vrot.lane.b32.xlu0 %v336, 56
    %v338 = vpop.permute.xlu0 %337
    %vm339 = vcmask 490944
    %340 = vst.msk [vmem:[#allocation0] ss:$8 sm:$0xf] %vm339, %v338
    %s341 = scalar_lea.vmem %s0, 13
    %v342 = vld [vmem:[%s341] sm:$0x1]
    %s343 = scalar_lea.vmem %s0, 44
    %v344 = vld [vmem:[%s343] sm:$0x2]
    %vm345 = vcmask 1041409
    %v346 = vsel %vm345, %v344, %v342
    %s347 = scalar_lea.vmem %s0, 75
    %v348 = vld [vmem:[%s347] sm:$0x4]
    %vm349 = vcmask 1042434
    %v350 = vsel %vm349, %v348, %v346
    %s351 = scalar_lea.vmem %s0, 106
    %v352 = vld [vmem:[%s351] sm:$0x8]
    %vm353 = vcmask 1043459
    %v354 = vsel %vm353, %v352, %v350
    %355 = vrot.lane.b32.xlu0 %v354, 52
    %v356 = vpop.permute.xlu0 %355
    %vm357 = vcmask 458144
    %358 = vst.msk [vmem:[#allocation0] ss:$8 sm:$0xf] %vm357, %v356
    %s359 = scalar_lea.vmem %s0, 12
    %v360 = vld [vmem:[%s359] sm:$0x1]
    %s361 = scalar_lea.vmem %s0, 43
    %v362 = vld [vmem:[%s361] sm:$0x2]
    %vm363 = vcmask 1041409
    %v364 = vsel %vm363, %v362, %v360
    %s365 = scalar_lea.vmem %s0, 74
    %v366 = vld [vmem:[%s365] sm:$0x4]
    %vm367 = vcmask 1042434
    %v368 = vsel %vm367, %v366, %v364
    %s369 = scalar_lea.vmem %s0, 105
    %v370 = vld [vmem:[%s369] sm:$0x8]
    %vm371 = vcmask 1043459
    %v372 = vsel %vm371, %v370, %v368
    %373 = vrot.lane.b32.xlu0 %v372, 48
    %v374 = vpop.permute.xlu0 %373
    %vm375 = vcmask 425344
    %376 = vst.msk [vmem:[#allocation0] ss:$8 sm:$0xf] %vm375, %v374
    %s377 = scalar_lea.vmem %s0, 11
    %v378 = vld [vmem:[%s377] sm:$0x1]
    %s379 = scalar_lea.vmem %s0, 42
    %v380 = vld [vmem:[%s379] sm:$0x2]
    %vm381 = vcmask 1041409
    %v382 = vsel %vm381, %v380, %v378
    %s383 = scalar_lea.vmem %s0, 73
    %v384 = vld [vmem:[%s383] sm:$0x4]
    %vm385 = vcmask 1042434
    %v386 = vsel %vm385, %v384, %v382
    %s387 = scalar_lea.vmem %s0, 104
    %v388 = vld [vmem:[%s387] sm:$0x8]
    %vm389 = vcmask 1043459
    %v390 = vsel %vm389, %v388, %v386
    %391 = vrot.lane.b32.xlu0 %v390, 44
    %v392 = vpop.permute.xlu0 %391
    %vm393 = vcmask 392544
    %394 = vst.msk [vmem:[#allocation0] ss:$8 sm:$0xf] %vm393, %v392
    %s395 = scalar_lea.vmem %s0, 10
    %v396 = vld [vmem:[%s395] sm:$0x1]
    %s397 = scalar_lea.vmem %s0, 41
    %v398 = vld [vmem:[%s397] sm:$0x2]
    %vm399 = vcmask 1041409
    %v400 = vsel %vm399, %v398, %v396
    %s401 = scalar_lea.vmem %s0, 72
    %v402 = vld [vmem:[%s401] sm:$0x4]
    %vm403 = vcmask 1042434
    %v404 = vsel %vm403, %v402, %v400
    %s405 = scalar_lea.vmem %s0, 103
    %v406 = vld [vmem:[%s405] sm:$0x8]
    %vm407 = vcmask 1043459
    %v408 = vsel %vm407, %v406, %v404
    %409 = vrot.lane.b32.xlu0 %v408, 40
    %v410 = vpop.permute.xlu0 %409
    %vm411 = vcmask 359744
    %412 = vst.msk [vmem:[#allocation0] ss:$8 sm:$0xf] %vm411, %v410
    %s413 = scalar_lea.vmem %s0, 9
    %v414 = vld [vmem:[%s413] sm:$0x1]
    %s415 = scalar_lea.vmem %s0, 40
    %v416 = vld [vmem:[%s415] sm:$0x2]
    %vm417 = vcmask 1041409
    %v418 = vsel %vm417, %v416, %v414
    %s419 = scalar_lea.vmem %s0, 71
    %v420 = vld [vmem:[%s419] sm:$0x4]
    %vm421 = vcmask 1042434
    %v422 = vsel %vm421, %v420, %v418
    %s423 = scalar_lea.vmem %s0, 102
    %v424 = vld [vmem:[%s423] sm:$0x8]
    %vm425 = vcmask 1043459
    %v426 = vsel %vm425, %v424, %v422
    %427 = vrot.lane.b32.xlu0 %v426, 36
    %v428 = vpop.permute.xlu0 %427
    %vm429 = vcmask 326944
    %430 = vst.msk [vmem:[#allocation0] ss:$8 sm:$0xf] %vm429, %v428
    %s431 = scalar_lea.vmem %s0, 8
    %v432 = vld [vmem:[%s431] sm:$0x1]
    %s433 = scalar_lea.vmem %s0, 39
    %v434 = vld [vmem:[%s433] sm:$0x2]
    %vm435 = vcmask 1041409
    %v436 = vsel %vm435, %v434, %v432
    %s437 = scalar_lea.vmem %s0, 70
    %v438 = vld [vmem:[%s437] sm:$0x4]
    %vm439 = vcmask 1042434
    %v440 = vsel %vm439, %v438, %v436
    %s441 = scalar_lea.vmem %s0, 101
    %v442 = vld [vmem:[%s441] sm:$0x8]
    %vm443 = vcmask 1043459
    %v444 = vsel %vm443, %v442, %v440
    %445 = vrot.lane.b32.xlu0 %v444, 32
    %v446 = vpop.permute.xlu0 %445
    %vm447 = vcmask 294144
    %448 = vst.msk [vmem:[#allocation0] ss:$8 sm:$0xf] %vm447, %v446
    %s449 = scalar_lea.vmem %s0, 7
    %v450 = vld [vmem:[%s449] sm:$0x1]
    %s451 = scalar_lea.vmem %s0, 38
    %v452 = vld [vmem:[%s451] sm:$0x2]
    %vm453 = vcmask 1041409
    %v454 = vsel %vm453, %v452, %v450
    %s455 = scalar_lea.vmem %s0, 69
    %v456 = vld [vmem:[%s455] sm:$0x4]
    %vm457 = vcmask 1042434
    %v458 = vsel %vm457, %v456, %v454
    %s459 = scalar_lea.vmem %s0, 100
    %v460 = vld [vmem:[%s459] sm:$0x8]
    %vm461 = vcmask 1043459
    %v462 = vsel %vm461, %v460, %v458
    %463 = vrot.lane.b32.xlu0 %v462, 28
    %v464 = vpop.permute.xlu0 %463
    %vm465 = vcmask 261344
    %466 = vst.msk [vmem:[#allocation0] ss:$8 sm:$0xf] %vm465, %v464
    %s467 = scalar_lea.vmem %s0, 6
    %v468 = vld [vmem:[%s467] sm:$0x1]
    %s469 = scalar_lea.vmem %s0, 37
    %v470 = vld [vmem:[%s469] sm:$0x2]
    %vm471 = vcmask 1041409
    %v472 = vsel %vm471, %v470, %v468
    %s473 = scalar_lea.vmem %s0, 68
    %v474 = vld [vmem:[%s473] sm:$0x4]
    %vm475 = vcmask 1042434
    %v476 = vsel %vm475, %v474, %v472
    %s477 = scalar_lea.vmem %s0, 99
    %v478 = vld [vmem:[%s477] sm:$0x8]
    %vm479 = vcmask 1043459
    %v480 = vsel %vm479, %v478, %v476
    %481 = vrot.lane.b32.xlu0 %v480, 24
    %v482 = vpop.permute.xlu0 %481
    %vm483 = vcmask 228544
    %484 = vst.msk [vmem:[#allocation0] ss:$8 sm:$0xf] %vm483, %v482
    %s485 = scalar_lea.vmem %s0, 5
    %v486 = vld [vmem:[%s485] sm:$0x1]
    %s487 = scalar_lea.vmem %s0, 36
    %v488 = vld [vmem:[%s487] sm:$0x2]
    %vm489 = vcmask 1041409
    %v490 = vsel %vm489, %v488, %v486
    %s491 = scalar_lea.vmem %s0, 67
    %v492 = vld [vmem:[%s491] sm:$0x4]
    %vm493 = vcmask 1042434
    %v494 = vsel %vm493, %v492, %v490
    %s495 = scalar_lea.vmem %s0, 98
    %v496 = vld [vmem:[%s495] sm:$0x8]
    %vm497 = vcmask 1043459
    %v498 = vsel %vm497, %v496, %v494
    %499 = vrot.lane.b32.xlu0 %v498, 20
    %v500 = vpop.permute.xlu0 %499
    %vm501 = vcmask 195744
    %502 = vst.msk [vmem:[#allocation0] ss:$8 sm:$0xf] %vm501, %v500
    %s503 = scalar_lea.vmem %s0, 4
    %v504 = vld [vmem:[%s503] sm:$0x1]
    %s505 = scalar_lea.vmem %s0, 35
    %v506 = vld [vmem:[%s505] sm:$0x2]
    %vm507 = vcmask 1041409
    %v508 = vsel %vm507, %v506, %v504
    %s509 = scalar_lea.vmem %s0, 66
    %v510 = vld [vmem:[%s509] sm:$0x4]
    %vm511 = vcmask 1042434
    %v512 = vsel %vm511, %v510, %v508
    %s513 = scalar_lea.vmem %s0, 97
    %v514 = vld [vmem:[%s513] sm:$0x8]
    %vm515 = vcmask 1043459
    %v516 = vsel %vm515, %v514, %v512
    %517 = vrot.lane.b32.xlu0 %v516, 16
    %v518 = vpop.permute.xlu0 %517
    %vm519 = vcmask 162944
    %520 = vst.msk [vmem:[#allocation0] ss:$8 sm:$0xf] %vm519, %v518
    %s521 = scalar_lea.vmem %s0, 3
    %v522 = vld [vmem:[%s521] sm:$0x1]
    %s523 = scalar_lea.vmem %s0, 34
    %v524 = vld [vmem:[%s523] sm:$0x2]
    %vm525 = vcmask 1041409
    %v526 = vsel %vm525, %v524, %v522
    %s527 = scalar_lea.vmem %s0, 65
    %v528 = vld [vmem:[%s527] sm:$0x4]
    %vm529 = vcmask 1042434
    %v530 = vsel %vm529, %v528, %v526
    %s531 = scalar_lea.vmem %s0, 96
    %v532 = vld [vmem:[%s531] sm:$0x8]
    %vm533 = vcmask 1043459
    %v534 = vsel %vm533, %v532, %v530
    %535 = vrot.lane.b32.xlu0 %v534, 12
    %v536 = vpop.permute.xlu0 %535
    %vm537 = vcmask 130144
    %538 = vst.msk [vmem:[#allocation0] ss:$8 sm:$0xf] %vm537, %v536
    %s539 = scalar_lea.vmem %s0, 2
    %v540 = vld [vmem:[%s539] sm:$0x1]
    %s541 = scalar_lea.vmem %s0, 33
    %v542 = vld [vmem:[%s541] sm:$0x2]
    %vm543 = vcmask 1041409
    %v544 = vsel %vm543, %v542, %v540
    %s545 = scalar_lea.vmem %s0, 64
    %v546 = vld [vmem:[%s545] sm:$0x4]
    %vm547 = vcmask 1042434
    %v548 = vsel %vm547, %v546, %v544
    %s549 = scalar_lea.vmem %s0, 95
    %v550 = vld [vmem:[%s549] sm:$0x8]
    %vm551 = vcmask 1043459
    %v552 = vsel %vm551, %v550, %v548
    %553 = vrot.lane.b32.xlu0 %v552, 8
    %v554 = vpop.permute.xlu0 %553
    %vm555 = vcmask 97344
    %556 = vst.msk [vmem:[#allocation0] ss:$8 sm:$0xf] %vm555, %v554
    %s557 = scalar_lea.vmem %s0, 1
    %v558 = vld [vmem:[%s557] sm:$0x1]
    %s559 = scalar_lea.vmem %s0, 32
    %v560 = vld [vmem:[%s559] sm:$0x2]
    %vm561 = vcmask 1041409
    %v562 = vsel %vm561, %v560, %v558
    %s563 = scalar_lea.vmem %s0, 63
    %v564 = vld [vmem:[%s563] sm:$0x4]
    %vm565 = vcmask 1042434
    %v566 = vsel %vm565, %v564, %v562
    %s567 = scalar_lea.vmem %s0, 94
    %v568 = vld [vmem:[%s567] sm:$0x8]
    %vm569 = vcmask 1043459
    %v570 = vsel %vm569, %v568, %v566
    %571 = vrot.lane.b32.xlu0 %v570, 4
    %v572 = vpop.permute.xlu0 %571
    %vm573 = vcmask 64544
    %574 = vst.msk [vmem:[#allocation0] ss:$8 sm:$0xf] %vm573, %v572
    %s576 = ssub.s32 2, 1
    %v577 = vld [vmem:[#allocation0] sm:%s576]
    %s579 = ssub.s32 2, 1
    %580 = vst [vmem:[%s1] sm:%s579] %v577
    %s581 = scalar_lea.vmem [#allocation0], 8
    %v582 = vld [vmem:[%s581] sm:%s576]
    %s584 = ssub.s32 2, 1
    %s585 = scalar_lea.vmem %s1, 1
    %586 = vst [vmem:[%s585] sm:%s584] %v582
    %s587 = scalar_lea.vmem [#allocation0], 16
    %v588 = vld [vmem:[%s587] sm:%s576]
    %s590 = ssub.s32 2, 1
    %s591 = scalar_lea.vmem %s1, 2
    %592 = vst [vmem:[%s591] sm:%s590] %v588
    %s593 = scalar_lea.vmem [#allocation0], 24
    %v594 = vld [vmem:[%s593] sm:%s576]
    %s596 = ssub.s32 2, 1
    %s597 = scalar_lea.vmem %s1, 3
    %598 = vst [vmem:[%s597] sm:%s596] %v594

// kernel: bottleneck_forward.5
$region0: #{bottleneck_forward.5}
  #allocation0 [shape = 'u32[]', space=smem, size = 0x4, offset = 0x4, fixed_abs, tag = 'smem constant byte address 0x4 - core index']
  #allocation1 [shape = 'u32[72,128]{1,0:T(1,128)}', space=vmem, size = 0x9000, scoped, tag = 'internal scratch']
  %s0 = inlined_call_operand.vmem [shape: f32[4,512], index: 0, kind: input, shape index: {}, may-alias: {0,4}]
  %s1 = inlined_call_operand.vmem [shape: bf16[4,512], index: 1, kind: input, shape index: {}]
  %s2 = inlined_call_operand.vmem [shape: f32[1,512], index: 2, kind: input, shape index: {}]
  %s3 = inlined_call_operand.vmem [shape: f32[1,512], index: 3, kind: input, shape index: {}]
  %s4 = inlined_call_operand.vmem [shape: f32[4,512], index: 4, kind: output, shape index: {}, may-alias: {0,4}]
  %s5 = sld [smem:[#allocation0]]
  $region26: #{bottleneck_forward.5} parent=0
    _
  %s7 = ssub.s32 1, %s5
  %s8 = scalar_select 0, %s7, %s5
  // Predicated region
  $region2: #{bottleneck_forward.5} parent=0 // pred_check
    _
  $region3: #{bottleneck_forward.5} parent=0 // pred_check_branch
    %10 = sbr.rel (0) target = $region5
  $region4: #{bottleneck_forward.5} parent=0 // pred_region
    _
  $region5: #{bottleneck_forward.5} parent=0 // pred_fallthru
    _
  // Predicated region
  $region6: #{bottleneck_forward.5} parent=0 // pred_check
    _
  $region7: #{bottleneck_forward.5} parent=0 // pred_check_branch
    %12 = sbr.rel (0) target = $region9
  $region8: #{bottleneck_forward.5} parent=0 // pred_region
    _
  $region9: #{bottleneck_forward.5} parent=0 // pred_fallthru
    _
  // Predicated region
  $region10: #{bottleneck_forward.5} parent=0 // pred_check
    _
  $region11: #{bottleneck_forward.5} parent=0 // pred_check_branch
    %14 = sbr.rel (0) target = $region13
  $region12: #{bottleneck_forward.5} parent=0 // pred_region
    _
  $region13: #{bottleneck_forward.5} parent=0 // pred_fallthru
    _
  // Predicated region
  $region14: #{bottleneck_forward.5} parent=0 // pred_check
    _
  $region15: #{bottleneck_forward.5} parent=0 // pred_check_branch
    %16 = sbr.rel (0) target = $region17
  $region16: #{bottleneck_forward.5} parent=0 // pred_region
    _
  $region17: #{bottleneck_forward.5} parent=0 // pred_fallthru
    _
  %v17 = vld [vmem:[%s1] sm:$0xff]
  %v18 = vunpack.c.l.bf16 %v17
  %v19 = vunpack.c.h.bf16 %v17
  %v20 = vld [vmem:[%s0] sm:$0xff]
  %v21 = vld [vmem:[%s0 + $0x8] sm:$0xff]
  %v22 = vld [vmem:[%s2] sm:$0xf]
  %v24 = vperm.slane %v22, 0
  %v25 = vperm.slane %v22, 1
  %v26 = vperm.slane %v22, 2
  %v27 = vperm.slane %v22, 3
  %v28 = vrot.slane %v25, 4
  %v29 = vrot.slane %v27, 4
  %vm30 = vcmask 1043456
  %v31 = vsel %vm30, %v24, %v28
  %v32 = vsel %vm30, %v26, %v29
  %v35 = vmul.f32 %v20, %v31
  %v36 = vmul.f32 %v21, %v32
  %v37 = vld [vmem:[%s3] sm:$0xf]
  %v39 = vperm.slane %v37, 0
  %v40 = vperm.slane %v37, 1
  %v41 = vperm.slane %v37, 2
  %v42 = vperm.slane %v37, 3
  %v43 = vrot.slane %v40, 4
  %v44 = vrot.slane %v42, 4
  %v45 = vsel %vm30, %v39, %v43
  %v46 = vsel %vm30, %v41, %v44
  %v49 = vadd.f32 %v35, %v45
  %v50 = vadd.f32 %v36, %v46
  %v51 = vmax.f32 %v49, 0.0
  %v52 = vmax.f32 %v50, 0.0
  %v53 = vadd.f32 %v18, %v51
  %v54 = vadd.f32 %v19, %v52
  %55 = vst [vmem:[%s4] sm:$0xff] %v53
  %56 = vst [vmem:[%s4 + $0x8] sm:$0xff] %v54
  // Predicated region
  $region18: #{bottleneck_forward.5} parent=0 // pred_check
    _
  $region19: #{bottleneck_forward.5} parent=0 // pred_check_branch
    %58 = sbr.rel (0) target = $region21
  $region20: #{bottleneck_forward.5} parent=0 // pred_region
    _
  $region21: #{bottleneck_forward.5} parent=0 // pred_fallthru
    _
  // Predicated region
  $region22: #{bottleneck_forward.5} parent=0 // pred_check
    _
  $region23: #{bottleneck_forward.5} parent=0 // pred_check_branch
    %60 = sbr.rel (0) target = $region25
  $region24: #{bottleneck_forward.5} parent=0 // pred_region
    _
  $region25: #{bottleneck_forward.5} parent=0 // pred_fallthru
    _

</llo_original>
